<compile_context>
chip_gen: v7x
topology: tpu7x:2x2x1
jax: 0.10.0
libtpu: 0.0.40
codegen_flags: <defaults>
</compile_context>

<pallas_src>
import functools

import jax
import jax.numpy as jnp
from jax.experimental import pallas as pl
from jax.experimental.pallas import tpu as pltpu

# ---- module hyper-parameters (mirrors the PyTorch module defaults) -----------
CH = 8            # `ch`
NUM_HEAD = 4      # `num_head`
CH_HEAD = 32      # `ch_head`
HD = NUM_HEAD * CH_HEAD
SCALE = CH_HEAD ** (-0.5)
GN_EPS = 1e-5     # nn.GroupNorm default eps


def _attention_kernel(x_ref, bqkv_ref, wqkv_ref, wout_ref, bout_ref, o_ref,
                      *, bt, n, c):
    """One grid step == `bt` batch items (bt*n points) of the sparse tensor."""
    rows = bt * n
    x3 = x_ref[...]                                    # (bt, n, c) f32

    # --- GroupNorm(num_groups=1), per item, single-pass stats ----------------
    # (gamma/beta are folded into the qkv projection in the wrapper)
    s1 = jnp.sum(jnp.sum(x3, axis=2, keepdims=True), axis=1, keepdims=True)
    s2 = jnp.sum(jnp.sum(x3 * x3, axis=2, keepdims=True), axis=1, keepdims=True)
    denom = 1.0 / float(n * c)
    mean = s1 * denom                                  # (bt, 1, 1)
    var = s2 * denom - mean * mean                     # biased variance (PyTorch GN)
    inv = jax.lax.rsqrt(var + GN_EPS)
    xhat = ((x3 - mean) * inv).reshape(rows, c)        # leading-dim merge (free)

    # --- to_qkv (gamma/beta/q-scale folded): one big (rows, C) x (C, 3HD) ----
    qkv = jnp.dot(xhat.astype(jnp.bfloat16), wqkv_ref[...],
                  preferred_element_type=jnp.float32) + bqkv_ref[...]
    qkv = qkv.astype(jnp.bfloat16)                     # matmul operand dtype

    wout = wout_ref[...]                               # (HD, C) bf16
    out_acc = jnp.zeros((rows, c), jnp.float32)

    # --- multi-head attention, batched over the bt items per head ------------
    for h in range(NUM_HEAD):                          # static unroll (4 heads)
        q = qkv[:, h * CH_HEAD:(h + 1) * CH_HEAD].reshape(bt, n, CH_HEAD)
        k = qkv[:, HD + h * CH_HEAD: HD + (h + 1) * CH_HEAD].reshape(bt, n, CH_HEAD)
        v = qkv[:, 2 * HD + h * CH_HEAD: 2 * HD + (h + 1) * CH_HEAD].reshape(
            bt, n, CH_HEAD)

        s = jnp.einsum('bqd,bkd->bqk', q, k,
                       preferred_element_type=jnp.float32)        # (bt, n, n) f32
        s = s - jnp.max(s, axis=-1, keepdims=True)
        p = jnp.exp(s)
        l = jnp.sum(p, axis=-1, keepdims=True)                    # (bt, n, 1)

        ov = jnp.einsum('bqk,bkd->bqd', p.astype(jnp.bfloat16), v,
                        preferred_element_type=jnp.float32)       # (bt, n, D)
        # deferred softmax normalization on the (n, D) result, via EUP vrcp
        ov = ov * pl.reciprocal(l, approx=True)

        # accumulate this head straight through its w_out slice (no concat)
        out_acc = out_acc + jnp.dot(
            ov.reshape(rows, CH_HEAD).astype(jnp.bfloat16),
            wout[h * CH_HEAD:(h + 1) * CH_HEAD, :],
            preferred_element_type=jnp.float32)

    # --- to_out bias + residual with the original (pre-norm) features --------
    out_pt = out_acc + bout_ref[...]                   # (rows, c)
    o_ref[...] = out_pt.reshape(bt, n, c) + x3         # leading-dim split (free)


def _pick_block_items(B, N, C, *, max_vmem_bytes=8 << 20):
    """Batch items per grid step: big M for the projections, VMEM-bounded."""
    def step_bytes(d):
        rows = d * N
        return (4 * rows * C * 4            # x in + out blocks, double-buffered
                + rows * 3 * HD * 6          # qkv (f32 accum + bf16 copy)
                + d * N * N * 4 * 2          # one head's scores + probs
                + rows * HD * 4)             # slack for per-head intermediates

    divisors = [d for d in range(1, B + 1) if B % d == 0]
    fits = [d for d in divisors if step_bytes(d) <= max_vmem_bytes]
    if not fits:
        return 1
    # Prefer >= 2 grid steps (v7x has 2 TensorCores) while keeping >= 128 rows
    # of per-point work per step for MXU row utilization.
    pref = [d for d in fits if B // d >= 2 and d * N >= 128]
    return min(pref) if pref else max(fits)


def attention_pallas(x, gn_w, gn_b, w_qkv, w_out, b_out, *, block_items=None):
    """x: (B, N, C) float32.  Returns (B, N, C) float32."""
    B, N, C = x.shape
    assert C == CH and w_qkv.shape == (C, 3 * HD) and w_out.shape == (HD, C)

    # Fold GroupNorm affine (gamma, beta) and the q scale into the projection:
    #   (xhat * gamma + beta) @ W          == xhat @ (gamma[:, None] * W) + beta @ W
    #   q * scale                          == fold scale into the q columns
    w_f = gn_w.reshape(C, 1) * w_qkv                          # (C, 3HD)
    b_f = gn_b.reshape(1, C) @ w_qkv                          # (1, 3HD)
    col_scale = jnp.concatenate(
        [jnp.full((HD,), SCALE, jnp.float32), jnp.ones((2 * HD,), jnp.float32)])
    w_f = w_f * col_scale[None, :]
    b_f = b_f * col_scale[None, :]

    bt = block_items if block_items is not None else _pick_block_items(B, N, C)
    assert B % bt == 0
    grid = (B // bt,)

    out = pl.pallas_call(
        functools.partial(_attention_kernel, bt=bt, n=N, c=C),
        out_shape=jax.ShapeDtypeStruct((B, N, C), jnp.float32),
        grid=grid,
        in_specs=[
            pl.BlockSpec((bt, N, C), lambda i: (i, 0, 0)),    # x (bt items)
            pl.BlockSpec((1, 3 * HD), lambda i: (0, 0)),      # folded qkv bias (f32)
            pl.BlockSpec((C, 3 * HD), lambda i: (0, 0)),      # folded qkv weight (bf16)
            pl.BlockSpec((HD, C), lambda i: (0, 0)),          # to_out weight (bf16)
            pl.BlockSpec((1, C), lambda i: (0, 0)),           # to_out bias (f32)
        ],
        out_specs=pl.BlockSpec((bt, N, C), lambda i: (i, 0, 0)),
        compiler_params=pltpu.CompilerParams(
            dimension_semantics=("parallel",)),
    )(x, b_f.astype(jnp.float32), w_f.astype(jnp.bfloat16),
      w_out.astype(jnp.bfloat16), b_out.astype(jnp.float32))

    return out


# ---- pure-JAX f32 reference (for a sanity check) -----------------------------
def attention_ref(x, gn_w, gn_b, w_qkv, w_out, b_out):
    B, N, C = x.shape
    mean = jnp.mean(x, axis=(1, 2), keepdims=True)
    var = jnp.mean((x - mean) ** 2, axis=(1, 2), keepdims=True)
    xn = (x - mean) / jnp.sqrt(var + GN_EPS) * gn_w[0] + gn_b[0]
    qkv = jnp.einsum('bnc,cf->bnf', xn, w_qkv)
    q, k, v = jnp.split(qkv, 3, axis=-1)
    q = q.reshape(B, N, NUM_HEAD, CH_HEAD) * SCALE
    k = k.reshape(B, N, NUM_HEAD, CH_HEAD)
    v = v.reshape(B, N, NUM_HEAD, CH_HEAD)
    s = jnp.einsum('bihd,bjhd->bhij', q, k)
    p = jax.nn.softmax(s, axis=-1)
    o = jnp.einsum('bhij,bjhd->bihd', p, v).reshape(B, N, HD)
    out = jnp.einsum('bnf,fc->bnc', o, w_out) + b_out[0]
    return out + x


if __name__ == "__main__":
    B, N = 2, 16

    key = jax.random.PRNGKey(0)
    k_x, k_gw, k_gb, k_qkv, k_out, k_b = jax.random.split(key, 6)

    # deterministic synthetic parameters (shapes from the module __init__)
    x = jax.random.normal(k_x, (B, N, CH), dtype=jnp.float32)
    gn_w = (1.0 + 0.1 * jax.random.normal(k_gw, (1, CH))).astype(jnp.float32)
    gn_b = (0.1 * jax.random.normal(k_gb, (1, CH))).astype(jnp.float32)
    w_qkv = (0.05 * jax.random.normal(k_qkv, (CH, 3 * HD))).astype(jnp.float32)
    w_out = (0.05 * jax.random.normal(k_out, (HD, CH))).astype(jnp.float32)
    b_out = (0.1 * jax.random.normal(k_b, (1, CH))).astype(jnp.float32)

    out = jax.block_until_ready(
        attention_pallas(x, gn_w, gn_b, w_qkv, w_out, b_out))

    ref = attention_ref(x, gn_w, gn_b, w_qkv, w_out, b_out)
    assert out.shape == (B, N, CH)
    assert jnp.allclose(out, ref, rtol=2e-2, atol=2e-2), "mismatch vs reference"

    print("KERNEL_OK")
</pallas_src>

<mosaic_0001>
module attributes {stable_mosaic.version = 11 : i64} {
  func.func @_attention_kernel(%arg0: i32, %arg1: memref<2x16x8xf32, #tpu.memory_space<vmem>>, %arg2: memref<1x384xf32, #tpu.memory_space<vmem>>, %arg3: memref<8x384xbf16, #tpu.memory_space<vmem>>, %arg4: memref<128x8xbf16, #tpu.memory_space<vmem>>, %arg5: memref<1x8xf32, #tpu.memory_space<vmem>>, %arg6: memref<2x16x8xf32, #tpu.memory_space<vmem>>) attributes {dimension_semantics = [#tpu.dimension_semantics<parallel>], iteration_bounds = array<i64: 1>, scalar_prefetch = 0 : i64, scratch_operands = 0 : i64, tpu.core_type = #tpu.core_type<tc>, window_params = [{transform_indices = @transform_0, window_bounds = array<i64: 2, 16, 8>}, {pipeline_mode = #tpu.pipeline_mode<synchronous>, transform_indices = @transform_1, window_bounds = array<i64: 1, 384>}, {pipeline_mode = #tpu.pipeline_mode<synchronous>, transform_indices = @transform_2, window_bounds = array<i64: 8, 384>}, {pipeline_mode = #tpu.pipeline_mode<synchronous>, transform_indices = @transform_3, window_bounds = array<i64: 128, 8>}, {pipeline_mode = #tpu.pipeline_mode<synchronous>, transform_indices = @transform_4, window_bounds = array<i64: 1, 8>}, {transform_indices = @transform_5, window_bounds = array<i64: 2, 16, 8>}]} {
    %c0 = arith.constant 0 : index
    %c0_0 = arith.constant 0 : index
    %c0_1 = arith.constant 0 : index
    %0 = vector.load %arg1[%c0, %c0_0, %c0_1] : memref<2x16x8xf32, #tpu.memory_space<vmem>>, vector<2x16x8xf32>
    %cst = arith.constant dense<0.000000e+00> : vector<2x16xf32>
    %1 = vector.multi_reduction <add>, %0, %cst [2] : vector<2x16x8xf32> to vector<2x16xf32>
    %2 = vector.shape_cast %1 : vector<2x16xf32> to vector<2x16x1xf32>
    %cst_2 = arith.constant dense<0.000000e+00> : vector<2x1xf32>
    %3 = vector.multi_reduction <add>, %2, %cst_2 [1] : vector<2x16x1xf32> to vector<2x1xf32>
    %4 = vector.shape_cast %3 : vector<2x1xf32> to vector<2x1x1xf32>
    %5 = arith.mulf %0, %0 : vector<2x16x8xf32>
    %cst_3 = arith.constant dense<0.000000e+00> : vector<2x16xf32>
    %6 = vector.multi_reduction <add>, %5, %cst_3 [2] : vector<2x16x8xf32> to vector<2x16xf32>
    %7 = vector.shape_cast %6 : vector<2x16xf32> to vector<2x16x1xf32>
    %cst_4 = arith.constant dense<0.000000e+00> : vector<2x1xf32>
    %8 = vector.multi_reduction <add>, %7, %cst_4 [1] : vector<2x16x1xf32> to vector<2x1xf32>
    %9 = vector.shape_cast %8 : vector<2x1xf32> to vector<2x1x1xf32>
    %cst_5 = arith.constant 7.812500e-03 : f32
    %10 = vector.broadcast %cst_5 : f32 to vector<2x1x1xf32>
    %11 = arith.mulf %4, %10 : vector<2x1x1xf32>
    %cst_6 = arith.constant 7.812500e-03 : f32
    %12 = vector.broadcast %cst_6 : f32 to vector<2x1x1xf32>
    %13 = arith.mulf %9, %12 : vector<2x1x1xf32>
    %14 = arith.mulf %11, %11 : vector<2x1x1xf32>
    %15 = arith.subf %13, %14 : vector<2x1x1xf32>
    %cst_7 = arith.constant 9.99999974E-6 : f32
    %16 = vector.broadcast %cst_7 : f32 to vector<2x1x1xf32>
    %17 = arith.addf %15, %16 : vector<2x1x1xf32>
    %18 = math.rsqrt %17 : vector<2x1x1xf32>
    %19 = vector.broadcast %11 : vector<2x1x1xf32> to vector<2x16x8xf32>
    %20 = arith.subf %0, %19 : vector<2x16x8xf32>
    %21 = vector.broadcast %18 : vector<2x1x1xf32> to vector<2x16x8xf32>
    %22 = arith.mulf %20, %21 : vector<2x16x8xf32>
    %23 = vector.shape_cast %22 : vector<2x16x8xf32> to vector<32x8xf32>
    %24 = arith.truncf %23 : vector<32x8xf32> to vector<32x8xbf16>
    %c0_8 = arith.constant 0 : index
    %c0_9 = arith.constant 0 : index
    %25 = vector.load %arg3[%c0_8, %c0_9] : memref<8x384xbf16, #tpu.memory_space<vmem>>, vector<8x384xbf16>
    %cst_10 = arith.constant dense<0.000000e+00> : vector<32x384xf32>
    %26 = tpu.matmul %24, %25, %cst_10 {dimension_numbers = #tpu.dot_dimension_numbers<[1], [0], [0], [1], [0, 0, 1, 1], [], []>} : vector<32x8xbf16>, vector<8x384xbf16>, vector<32x384xf32> -> vector<32x384xf32>
    %c0_11 = arith.constant 0 : index
    %c0_12 = arith.constant 0 : index
    %27 = vector.load %arg2[%c0_11, %c0_12] : memref<1x384xf32, #tpu.memory_space<vmem>>, vector<1x384xf32>
    %28 = vector.broadcast %27 : vector<1x384xf32> to vector<32x384xf32>
    %29 = arith.addf %26, %28 : vector<32x384xf32>
    %30 = arith.truncf %29 : vector<32x384xf32> to vector<32x384xbf16>
    %c0_13 = arith.constant 0 : index
    %c0_14 = arith.constant 0 : index
    %31 = vector.load %arg4[%c0_13, %c0_14] : memref<128x8xbf16, #tpu.memory_space<vmem>>, vector<128x8xbf16>
    %cst_15 = arith.constant 0.000000e+00 : f32
    %32 = vector.broadcast %cst_15 : f32 to vector<32x8xf32>
    %33 = vector.extract_strided_slice %30 {offsets = [0, 0], sizes = [32, 32], strides = [1, 1]} : vector<32x384xbf16> to vector<32x32xbf16>
    %34 = vector.shape_cast %33 : vector<32x32xbf16> to vector<2x16x32xbf16>
    %35 = vector.extract_strided_slice %30 {offsets = [0, 128], sizes = [32, 32], strides = [1, 1]} : vector<32x384xbf16> to vector<32x32xbf16>
    %36 = vector.shape_cast %35 : vector<32x32xbf16> to vector<2x16x32xbf16>
    %37 = vector.extract_strided_slice %30 {offsets = [0, 256], sizes = [32, 32], strides = [1, 1]} : vector<32x384xbf16> to vector<32x32xbf16>
    %38 = vector.shape_cast %37 : vector<32x32xbf16> to vector<2x16x32xbf16>
    "tpu.trace_start"() <{level = 10 : i32, message = "bqd,bkd->bqk"}> : () -> ()
    %cst_16 = arith.constant dense<0.000000e+00> : vector<2x16x16xf32>
    %39 = tpu.matmul %34, %36, %cst_16 {dimension_numbers = #tpu.dot_dimension_numbers<[2], [2], [1], [1], [0, 0, 0, 1, 1, 1], [0], [0]>} : vector<2x16x32xbf16>, vector<2x16x32xbf16>, vector<2x16x16xf32> -> vector<2x16x16xf32>
    "tpu.trace_stop"() : () -> ()
    %cst_17 = arith.constant dense<0xFF800000> : vector<2x16xf32>
    %40 = vector.multi_reduction <maximumf>, %39, %cst_17 [2] : vector<2x16x16xf32> to vector<2x16xf32>
    %41 = vector.shape_cast %40 : vector<2x16xf32> to vector<2x16x1xf32>
    %42 = vector.broadcast %41 : vector<2x16x1xf32> to vector<2x16x16xf32>
    %43 = arith.subf %39, %42 : vector<2x16x16xf32>
    %44 = math.exp %43 : vector<2x16x16xf32>
    %cst_18 = arith.constant dense<0.000000e+00> : vector<2x16xf32>
    %45 = vector.multi_reduction <add>, %44, %cst_18 [2] : vector<2x16x16xf32> to vector<2x16xf32>
    %46 = vector.shape_cast %45 : vector<2x16xf32> to vector<2x16x1xf32>
    %47 = arith.truncf %44 : vector<2x16x16xf32> to vector<2x16x16xbf16>
    "tpu.trace_start"() <{level = 10 : i32, message = "bqk,bkd->bqd"}> : () -> ()
    %cst_19 = arith.constant dense<0.000000e+00> : vector<2x16x32xf32>
    %48 = tpu.matmul %47, %38, %cst_19 {dimension_numbers = #tpu.dot_dimension_numbers<[2], [1], [1], [2], [0, 0, 0, 1, 1, 2], [0], [0]>} : vector<2x16x16xbf16>, vector<2x16x32xbf16>, vector<2x16x32xf32> -> vector<2x16x32xf32>
    "tpu.trace_stop"() : () -> ()
    %49 = tpu.reciprocal %46 {approx = true} : vector<2x16x1xf32> -> vector<2x16x1xf32>
    %50 = vector.broadcast %49 : vector<2x16x1xf32> to vector<2x16x32xf32>
    %51 = arith.mulf %48, %50 : vector<2x16x32xf32>
    %52 = vector.shape_cast %51 : vector<2x16x32xf32> to vector<32x32xf32>
    %53 = arith.truncf %52 : vector<32x32xf32> to vector<32x32xbf16>
    %54 = vector.extract_strided_slice %31 {offsets = [0, 0], sizes = [32, 8], strides = [1, 1]} : vector<128x8xbf16> to vector<32x8xbf16>
    %cst_20 = arith.constant dense<0.000000e+00> : vector<32x8xf32>
    %55 = tpu.matmul %53, %54, %cst_20 {dimension_numbers = #tpu.dot_dimension_numbers<[1], [0], [0], [1], [0, 0, 1, 1], [], []>} : vector<32x32xbf16>, vector<32x8xbf16>, vector<32x8xf32> -> vector<32x8xf32>
    %56 = arith.addf %32, %55 : vector<32x8xf32>
    %57 = vector.extract_strided_slice %30 {offsets = [0, 32], sizes = [32, 32], strides = [1, 1]} : vector<32x384xbf16> to vector<32x32xbf16>
    %58 = vector.shape_cast %57 : vector<32x32xbf16> to vector<2x16x32xbf16>
    %59 = vector.extract_strided_slice %30 {offsets = [0, 160], sizes = [32, 32], strides = [1, 1]} : vector<32x384xbf16> to vector<32x32xbf16>
    %60 = vector.shape_cast %59 : vector<32x32xbf16> to vector<2x16x32xbf16>
    %61 = vector.extract_strided_slice %30 {offsets = [0, 288], sizes = [32, 32], strides = [1, 1]} : vector<32x384xbf16> to vector<32x32xbf16>
    %62 = vector.shape_cast %61 : vector<32x32xbf16> to vector<2x16x32xbf16>
    "tpu.trace_start"() <{level = 10 : i32, message = "bqd,bkd->bqk"}> : () -> ()
    %cst_21 = arith.constant dense<0.000000e+00> : vector<2x16x16xf32>
    %63 = tpu.matmul %58, %60, %cst_21 {dimension_numbers = #tpu.dot_dimension_numbers<[2], [2], [1], [1], [0, 0, 0, 1, 1, 1], [0], [0]>} : vector<2x16x32xbf16>, vector<2x16x32xbf16>, vector<2x16x16xf32> -> vector<2x16x16xf32>
    "tpu.trace_stop"() : () -> ()
    %cst_22 = arith.constant dense<0xFF800000> : vector<2x16xf32>
    %64 = vector.multi_reduction <maximumf>, %63, %cst_22 [2] : vector<2x16x16xf32> to vector<2x16xf32>
    %65 = vector.shape_cast %64 : vector<2x16xf32> to vector<2x16x1xf32>
    %66 = vector.broadcast %65 : vector<2x16x1xf32> to vector<2x16x16xf32>
    %67 = arith.subf %63, %66 : vector<2x16x16xf32>
    %68 = math.exp %67 : vector<2x16x16xf32>
    %cst_23 = arith.constant dense<0.000000e+00> : vector<2x16xf32>
    %69 = vector.multi_reduction <add>, %68, %cst_23 [2] : vector<2x16x16xf32> to vector<2x16xf32>
    %70 = vector.shape_cast %69 : vector<2x16xf32> to vector<2x16x1xf32>
    %71 = arith.truncf %68 : vector<2x16x16xf32> to vector<2x16x16xbf16>
    "tpu.trace_start"() <{level = 10 : i32, message = "bqk,bkd->bqd"}> : () -> ()
    %cst_24 = arith.constant dense<0.000000e+00> : vector<2x16x32xf32>
    %72 = tpu.matmul %71, %62, %cst_24 {dimension_numbers = #tpu.dot_dimension_numbers<[2], [1], [1], [2], [0, 0, 0, 1, 1, 2], [0], [0]>} : vector<2x16x16xbf16>, vector<2x16x32xbf16>, vector<2x16x32xf32> -> vector<2x16x32xf32>
    "tpu.trace_stop"() : () -> ()
    %73 = tpu.reciprocal %70 {approx = true} : vector<2x16x1xf32> -> vector<2x16x1xf32>
    %74 = vector.broadcast %73 : vector<2x16x1xf32> to vector<2x16x32xf32>
    %75 = arith.mulf %72, %74 : vector<2x16x32xf32>
    %76 = vector.shape_cast %75 : vector<2x16x32xf32> to vector<32x32xf32>
    %77 = arith.truncf %76 : vector<32x32xf32> to vector<32x32xbf16>
    %78 = vector.extract_strided_slice %31 {offsets = [32, 0], sizes = [32, 8], strides = [1, 1]} : vector<128x8xbf16> to vector<32x8xbf16>
    %cst_25 = arith.constant dense<0.000000e+00> : vector<32x8xf32>
    %79 = tpu.matmul %77, %78, %cst_25 {dimension_numbers = #tpu.dot_dimension_numbers<[1], [0], [0], [1], [0, 0, 1, 1], [], []>} : vector<32x32xbf16>, vector<32x8xbf16>, vector<32x8xf32> -> vector<32x8xf32>
    %80 = arith.addf %56, %79 : vector<32x8xf32>
    %81 = vector.extract_strided_slice %30 {offsets = [0, 64], sizes = [32, 32], strides = [1, 1]} : vector<32x384xbf16> to vector<32x32xbf16>
    %82 = vector.shape_cast %81 : vector<32x32xbf16> to vector<2x16x32xbf16>
    %83 = vector.extract_strided_slice %30 {offsets = [0, 192], sizes = [32, 32], strides = [1, 1]} : vector<32x384xbf16> to vector<32x32xbf16>
    %84 = vector.shape_cast %83 : vector<32x32xbf16> to vector<2x16x32xbf16>
    %85 = vector.extract_strided_slice %30 {offsets = [0, 320], sizes = [32, 32], strides = [1, 1]} : vector<32x384xbf16> to vector<32x32xbf16>
    %86 = vector.shape_cast %85 : vector<32x32xbf16> to vector<2x16x32xbf16>
    "tpu.trace_start"() <{level = 10 : i32, message = "bqd,bkd->bqk"}> : () -> ()
    %cst_26 = arith.constant dense<0.000000e+00> : vector<2x16x16xf32>
    %87 = tpu.matmul %82, %84, %cst_26 {dimension_numbers = #tpu.dot_dimension_numbers<[2], [2], [1], [1], [0, 0, 0, 1, 1, 1], [0], [0]>} : vector<2x16x32xbf16>, vector<2x16x32xbf16>, vector<2x16x16xf32> -> vector<2x16x16xf32>
    "tpu.trace_stop"() : () -> ()
    %cst_27 = arith.constant dense<0xFF800000> : vector<2x16xf32>
    %88 = vector.multi_reduction <maximumf>, %87, %cst_27 [2] : vector<2x16x16xf32> to vector<2x16xf32>
    %89 = vector.shape_cast %88 : vector<2x16xf32> to vector<2x16x1xf32>
    %90 = vector.broadcast %89 : vector<2x16x1xf32> to vector<2x16x16xf32>
    %91 = arith.subf %87, %90 : vector<2x16x16xf32>
    %92 = math.exp %91 : vector<2x16x16xf32>
    %cst_28 = arith.constant dense<0.000000e+00> : vector<2x16xf32>
    %93 = vector.multi_reduction <add>, %92, %cst_28 [2] : vector<2x16x16xf32> to vector<2x16xf32>
    %94 = vector.shape_cast %93 : vector<2x16xf32> to vector<2x16x1xf32>
    %95 = arith.truncf %92 : vector<2x16x16xf32> to vector<2x16x16xbf16>
    "tpu.trace_start"() <{level = 10 : i32, message = "bqk,bkd->bqd"}> : () -> ()
    %cst_29 = arith.constant dense<0.000000e+00> : vector<2x16x32xf32>
    %96 = tpu.matmul %95, %86, %cst_29 {dimension_numbers = #tpu.dot_dimension_numbers<[2], [1], [1], [2], [0, 0, 0, 1, 1, 2], [0], [0]>} : vector<2x16x16xbf16>, vector<2x16x32xbf16>, vector<2x16x32xf32> -> vector<2x16x32xf32>
    "tpu.trace_stop"() : () -> ()
    %97 = tpu.reciprocal %94 {approx = true} : vector<2x16x1xf32> -> vector<2x16x1xf32>
    %98 = vector.broadcast %97 : vector<2x16x1xf32> to vector<2x16x32xf32>
    %99 = arith.mulf %96, %98 : vector<2x16x32xf32>
    %100 = vector.shape_cast %99 : vector<2x16x32xf32> to vector<32x32xf32>
    %101 = arith.truncf %100 : vector<32x32xf32> to vector<32x32xbf16>
    %102 = vector.extract_strided_slice %31 {offsets = [64, 0], sizes = [32, 8], strides = [1, 1]} : vector<128x8xbf16> to vector<32x8xbf16>
    %cst_30 = arith.constant dense<0.000000e+00> : vector<32x8xf32>
    %103 = tpu.matmul %101, %102, %cst_30 {dimension_numbers = #tpu.dot_dimension_numbers<[1], [0], [0], [1], [0, 0, 1, 1], [], []>} : vector<32x32xbf16>, vector<32x8xbf16>, vector<32x8xf32> -> vector<32x8xf32>
    %104 = arith.addf %80, %103 : vector<32x8xf32>
    %105 = vector.extract_strided_slice %30 {offsets = [0, 96], sizes = [32, 32], strides = [1, 1]} : vector<32x384xbf16> to vector<32x32xbf16>
    %106 = vector.shape_cast %105 : vector<32x32xbf16> to vector<2x16x32xbf16>
    %107 = vector.extract_strided_slice %30 {offsets = [0, 224], sizes = [32, 32], strides = [1, 1]} : vector<32x384xbf16> to vector<32x32xbf16>
    %108 = vector.shape_cast %107 : vector<32x32xbf16> to vector<2x16x32xbf16>
    %109 = vector.extract_strided_slice %30 {offsets = [0, 352], sizes = [32, 32], strides = [1, 1]} : vector<32x384xbf16> to vector<32x32xbf16>
    %110 = vector.shape_cast %109 : vector<32x32xbf16> to vector<2x16x32xbf16>
    "tpu.trace_start"() <{level = 10 : i32, message = "bqd,bkd->bqk"}> : () -> ()
    %cst_31 = arith.constant dense<0.000000e+00> : vector<2x16x16xf32>
    %111 = tpu.matmul %106, %108, %cst_31 {dimension_numbers = #tpu.dot_dimension_numbers<[2], [2], [1], [1], [0, 0, 0, 1, 1, 1], [0], [0]>} : vector<2x16x32xbf16>, vector<2x16x32xbf16>, vector<2x16x16xf32> -> vector<2x16x16xf32>
    "tpu.trace_stop"() : () -> ()
    %cst_32 = arith.constant dense<0xFF800000> : vector<2x16xf32>
    %112 = vector.multi_reduction <maximumf>, %111, %cst_32 [2] : vector<2x16x16xf32> to vector<2x16xf32>
    %113 = vector.shape_cast %112 : vector<2x16xf32> to vector<2x16x1xf32>
    %114 = vector.broadcast %113 : vector<2x16x1xf32> to vector<2x16x16xf32>
    %115 = arith.subf %111, %114 : vector<2x16x16xf32>
    %116 = math.exp %115 : vector<2x16x16xf32>
    %cst_33 = arith.constant dense<0.000000e+00> : vector<2x16xf32>
    %117 = vector.multi_reduction <add>, %116, %cst_33 [2] : vector<2x16x16xf32> to vector<2x16xf32>
    %118 = vector.shape_cast %117 : vector<2x16xf32> to vector<2x16x1xf32>
    %119 = arith.truncf %116 : vector<2x16x16xf32> to vector<2x16x16xbf16>
    "tpu.trace_start"() <{level = 10 : i32, message = "bqk,bkd->bqd"}> : () -> ()
    %cst_34 = arith.constant dense<0.000000e+00> : vector<2x16x32xf32>
    %120 = tpu.matmul %119, %110, %cst_34 {dimension_numbers = #tpu.dot_dimension_numbers<[2], [1], [1], [2], [0, 0, 0, 1, 1, 2], [0], [0]>} : vector<2x16x16xbf16>, vector<2x16x32xbf16>, vector<2x16x32xf32> -> vector<2x16x32xf32>
    "tpu.trace_stop"() : () -> ()
    %121 = tpu.reciprocal %118 {approx = true} : vector<2x16x1xf32> -> vector<2x16x1xf32>
    %122 = vector.broadcast %121 : vector<2x16x1xf32> to vector<2x16x32xf32>
    %123 = arith.mulf %120, %122 : vector<2x16x32xf32>
    %124 = vector.shape_cast %123 : vector<2x16x32xf32> to vector<32x32xf32>
    %125 = arith.truncf %124 : vector<32x32xf32> to vector<32x32xbf16>
    %126 = vector.extract_strided_slice %31 {offsets = [96, 0], sizes = [32, 8], strides = [1, 1]} : vector<128x8xbf16> to vector<32x8xbf16>
    %cst_35 = arith.constant dense<0.000000e+00> : vector<32x8xf32>
    %127 = tpu.matmul %125, %126, %cst_35 {dimension_numbers = #tpu.dot_dimension_numbers<[1], [0], [0], [1], [0, 0, 1, 1], [], []>} : vector<32x32xbf16>, vector<32x8xbf16>, vector<32x8xf32> -> vector<32x8xf32>
    %128 = arith.addf %104, %127 : vector<32x8xf32>
    %c0_36 = arith.constant 0 : index
    %c0_37 = arith.constant 0 : index
    %129 = vector.load %arg5[%c0_36, %c0_37] : memref<1x8xf32, #tpu.memory_space<vmem>>, vector<1x8xf32>
    %130 = vector.broadcast %129 : vector<1x8xf32> to vector<32x8xf32>
    %131 = arith.addf %128, %130 : vector<32x8xf32>
    %132 = vector.shape_cast %131 : vector<32x8xf32> to vector<2x16x8xf32>
    %133 = arith.addf %132, %0 : vector<2x16x8xf32>
    %c0_38 = arith.constant 0 : index
    %c0_39 = arith.constant 0 : index
    %c0_40 = arith.constant 0 : index
    %134 = vector.load %arg6[%c0_38, %c0_39, %c0_40] : memref<2x16x8xf32, #tpu.memory_space<vmem>>, vector<2x16x8xf32>
    tpu.vector_store %arg6[%c0_38, %c0_39, %c0_40], %133 {strides = array<i32>} : memref<2x16x8xf32, #tpu.memory_space<vmem>>, vector<2x16x8xf32>,
    return
  }
  func.func @transform_0(%arg0: i32) -> (i32, i32, i32) {
    %c0_i32 = arith.constant 0 : i32
    %c0_i32_0 = arith.constant 0 : i32
    %c0_i32_1 = arith.constant 0 : i32
    return %arg0, %c0_i32, %c0_i32_0 : i32, i32, i32
  }
  func.func @transform_1(%arg0: i32) -> (i32, i32) {
    %c0_i32 = arith.constant 0 : i32
    %c0_i32_0 = arith.constant 0 : i32
    %c0_i32_1 = arith.constant 0 : i32
    return %c0_i32, %c0_i32_0 : i32, i32
  }
  func.func @transform_2(%arg0: i32) -> (i32, i32) {
    %c0_i32 = arith.constant 0 : i32
    %c0_i32_0 = arith.constant 0 : i32
    %c0_i32_1 = arith.constant 0 : i32
    return %c0_i32, %c0_i32_0 : i32, i32
  }
  func.func @transform_3(%arg0: i32) -> (i32, i32) {
    %c0_i32 = arith.constant 0 : i32
    %c0_i32_0 = arith.constant 0 : i32
    %c0_i32_1 = arith.constant 0 : i32
    return %c0_i32, %c0_i32_0 : i32, i32
  }
  func.func @transform_4(%arg0: i32) -> (i32, i32) {
    %c0_i32 = arith.constant 0 : i32
    %c0_i32_0 = arith.constant 0 : i32
    %c0_i32_1 = arith.constant 0 : i32
    return %c0_i32, %c0_i32_0 : i32, i32
  }
  func.func @transform_5(%arg0: i32) -> (i32, i32, i32) {
    %c0_i32 = arith.constant 0 : i32
    %c0_i32_0 = arith.constant 0 : i32
    %c0_i32_1 = arith.constant 0 : i32
    return %arg0, %c0_i32, %c0_i32_0 : i32, i32, i32
  }
}

</mosaic_0001>

<llo_original>
// kernel: tpu_custom_call.1
$region0: #{tpu_custom_call.1}
  #allocation0 [shape = 'u32[]', space=smem, size = 0x4, offset = 0x4, fixed_abs, tag = 'smem constant byte address 0x4 - core index']
  #allocation1 [shape = 'u32[144,128]{1,0:T(1,128)}', space=vmem, size = 0x12000, scoped, tag = 'internal scratch']
  %s0 = inlined_call_operand.vmem [shape: f32[2,16,8], index: 0, kind: input, shape index: {}]
  %s1 = inlined_call_operand.vmem [shape: f32[1,384], index: 1, kind: input, shape index: {}]
  %s2 = inlined_call_operand.vmem [shape: bf16[8,384], index: 2, kind: input, shape index: {}]
  %s3 = inlined_call_operand.vmem [shape: bf16[128,8], index: 3, kind: input, shape index: {}]
  %s4 = inlined_call_operand.vmem [shape: f32[1,8], index: 4, kind: input, shape index: {}]
  %s5 = inlined_call_operand.vmem [shape: f32[2,16,8], index: 5, kind: output, shape index: {}]
  %s6 = sld [smem:[#allocation0]]
  $region30: #{tpu_custom_call.1} parent=0
    _
  %s8 = ssub.s32 1, %s6
  %s9 = scalar_select 0, %s8, %s6
  // Predicated region
  $region2: #{tpu_custom_call.1} parent=0 // pred_check
    _
  $region3: #{tpu_custom_call.1} parent=0 // pred_check_branch
    %11 = sbr.rel (0) target = $region5
  $region4: #{tpu_custom_call.1} parent=0 // pred_region
    _
  $region5: #{tpu_custom_call.1} parent=0 // pred_fallthru
    _
  // Predicated region
  $region6: #{tpu_custom_call.1} parent=0 // pred_check
    _
  $region7: #{tpu_custom_call.1} parent=0 // pred_check_branch
    %13 = sbr.rel (0) target = $region9
  $region8: #{tpu_custom_call.1} parent=0 // pred_region
    _
  $region9: #{tpu_custom_call.1} parent=0 // pred_fallthru
    _
  // Predicated region
  $region10: #{tpu_custom_call.1} parent=0 // pred_check
    _
  $region11: #{tpu_custom_call.1} parent=0 // pred_check_branch
    %15 = sbr.rel (0) target = $region13
  $region12: #{tpu_custom_call.1} parent=0 // pred_region
    _
  $region13: #{tpu_custom_call.1} parent=0 // pred_fallthru
    _
  // Predicated region
  $region14: #{tpu_custom_call.1} parent=0 // pred_check
    _
  $region15: #{tpu_custom_call.1} parent=0 // pred_check_branch
    %17 = sbr.rel (0) target = $region17
  $region16: #{tpu_custom_call.1} parent=0 // pred_region
    _
  $region17: #{tpu_custom_call.1} parent=0 // pred_fallthru
    _
  // Predicated region
  $region18: #{tpu_custom_call.1} parent=0 // pred_check
    _
  $region19: #{tpu_custom_call.1} parent=0 // pred_check_branch
    %19 = sbr.rel (0) target = $region21
  $region20: #{tpu_custom_call.1} parent=0 // pred_region
    _
  $region21: #{tpu_custom_call.1} parent=0 // pred_fallthru
    _
  %v21 = vld [vmem:[%s0] sm:$0xff]
  %v22 = vld [vmem:[%s0 + $0x8] sm:$0xff]
  %v23 = vld [vmem:[%s0 + $0x10] sm:$0xff]
  %v24 = vld [vmem:[%s0 + $0x18] sm:$0xff]
  %vm25 = vcmask 64512
  %v26 = vsel %vm25, %v21, 0.0
  %27 = vadd.xlane.f32.xlu0 %v26
  %v28 = vpop.xlane.xlu0 %27
  %v29 = vsel %vm25, %v22, 0.0
  %30 = vadd.xlane.f32.xlu0 %v29
  %v31 = vpop.xlane.xlu0 %30
  %v32 = vsel %vm25, %v23, 0.0
  %33 = vadd.xlane.f32.xlu0 %v32
  %v34 = vpop.xlane.xlu0 %33
  %v35 = vsel %vm25, %v24, 0.0
  %36 = vadd.xlane.f32.xlu0 %v35
  %v37 = vpop.xlane.xlu0 %36
  %v38 = vadd.f32 %v28, %v31
  %v39 = vrot.slane %v38, 4
  %v40 = vadd.f32 %v38, %v39
  %v41 = vrot.slane %v40, 2
  %v42 = vadd.f32 %v40, %v41
  %v43 = vrot.slane %v42, 1
  %v44 = vadd.f32 %v42, %v43
  %v45 = vadd.f32 %v34, %v37
  %v46 = vrot.slane %v45, 4
  %v47 = vadd.f32 %v45, %v46
  %v48 = vrot.slane %v47, 2
  %v49 = vadd.f32 %v47, %v48
  %v50 = vrot.slane %v49, 1
  %v51 = vadd.f32 %v49, %v50
  %v52 = vmul.f32 %v21, %v21
  %v53 = vmul.f32 %v22, %v22
  %v54 = vmul.f32 %v23, %v23
  %v55 = vmul.f32 %v24, %v24
  %v56 = vsel %vm25, %v52, 0.0
  %57 = vadd.xlane.f32.xlu0 %v56
  %v58 = vpop.xlane.xlu0 %57
  %v59 = vsel %vm25, %v53, 0.0
  %60 = vadd.xlane.f32.xlu0 %v59
  %v61 = vpop.xlane.xlu0 %60
  %v62 = vsel %vm25, %v54, 0.0
  %63 = vadd.xlane.f32.xlu0 %v62
  %v64 = vpop.xlane.xlu0 %63
  %v65 = vsel %vm25, %v55, 0.0
  %66 = vadd.xlane.f32.xlu0 %v65
  %v67 = vpop.xlane.xlu0 %66
  %v68 = vadd.f32 %v58, %v61
  %v69 = vrot.slane %v68, 4
  %v70 = vadd.f32 %v68, %v69
  %v71 = vrot.slane %v70, 2
  %v72 = vadd.f32 %v70, %v71
  %v73 = vrot.slane %v72, 1
  %v74 = vadd.f32 %v72, %v73
  %v75 = vadd.f32 %v64, %v67
  %v76 = vrot.slane %v75, 4
  %v77 = vadd.f32 %v75, %v76
  %v78 = vrot.slane %v77, 2
  %v79 = vadd.f32 %v77, %v78
  %v80 = vrot.slane %v79, 1
  %v81 = vadd.f32 %v79, %v80
  %v82 = vmul.f32 %v44, 0.0078125
  %v83 = vmul.f32 %v51, 0.0078125
  %v84 = vmul.f32 %v74, 0.0078125
  %v85 = vmul.f32 %v81, 0.0078125
  %v86 = vmul.f32 %v82, %v82
  %v87 = vmul.f32 %v83, %v83
  %v88 = vsub.f32 %v84, %v86
  %v89 = vsub.f32 %v85, %v87
  %v90 = vadd.f32 %v88, 1e-05
  %v91 = vadd.f32 %v89, 1e-05
  %v92 = vrsqrt.pop %v90
  %v93 = vrsqrt.pop %v91
  %v94 = vsub.f32 %v21, %v82
  %v95 = vsub.f32 %v22, %v82
  %v96 = vsub.f32 %v23, %v83
  %v97 = vsub.f32 %v24, %v83
  %v98 = vmul.f32 %v94, %v92
  %v99 = vmul.f32 %v95, %v92
  %v100 = vmul.f32 %v96, %v93
  %v101 = vmul.f32 %v97, %v93
  %v102 = vpack.c.bf16 %v99, %v98
  %v103 = vpack.c.bf16 %v101, %v100
  %v104 = vld [vmem:[%s2] sm:$0xff]
  %v105 = vld [vmem:[%s2 + $0x8] sm:$0xf]
  %v106 = vld [vmem:[%s1] sm:$0x7]
  %v108 = vlaneseq
  %v109 = vshrl.u32 %v108, 7
  %v110 = vsub.s32 0, %v109
  %v111 = vrot.slane %v106, %v110
  %v112 = vlaneseq
  %v113 = vshrl.u32 %v112, 7
  %v114 = vsub.s32 1, %v113
  %v115 = vrot.slane %v106, %v114
  %v116 = vlaneseq
  %v117 = vshrl.u32 %v116, 7
  %v118 = vsub.s32 2, %v117
  %v119 = vrot.slane %v106, %v118
  %v125 = vunpack.c.l.b16 %v104
  %v126 = vunpack.c.h.b16 %v104
  %v127 = vunpack.c.l.b16 %v105
  %v128 = vpack.c.b16 %v125, %v125
  %v129 = vpack.c.b16 %v126, %v126
  %v130 = vpack.c.b16 %v127, %v127
  %v132 = vsel %vm25, %v102, 0
  %v135 = vsel %vm25, %v103, 0
  %vm137 = vcmask 1043456
  %v139 = vsel %vm137, %v128, 0
  %v142 = vsel %vm137, %v129, 0
  %v145 = vsel %vm137, %v130, 0
  %147 = vmatprep.subr.bf16.mxu0 %v142
  %148 = vmatpush1.bf16.msra.mxu0 %v139
  %149 = vmatprep.subr.bf16.mxu0 0
  %150 = vmatpush1.bf16.msra.mxu0 0
  %151 = vmatprep.subr.bf16.mxu0 0
  %152 = vmatpush1.bf16.msra.mxu0 0
  %153 = vmatprep.subr.bf16.mxu0 0
  %154 = vmatpush1.bf16.msra.mxu0 0
  %155 = vmatprep.subr.bf16.mxu0 0
  %156 = vmatpush1.bf16.msra.mxu0 0
  %157 = vmatprep.subr.bf16.mxu0 0
  %158 = vmatpush1.bf16.msra.mxu0 0
  %159 = vmatprep.subr.bf16.mxu0 0
  %160 = vmatpush1.bf16.msra.mxu0 0
  %161 = vmatprep.subr.bf16.mxu0 0
  %162 = vmatpush1.bf16.msra.mxu0 0
  %163 = vmatprep.subr.bf16.mxu0 0
  %164 = vmatpush1.bf16.msra.mxu0 0
  %165 = vmatprep.subr.bf16.mxu0 0
  %166 = vmatpush1.bf16.msra.mxu0 0
  %167 = vmatprep.subr.bf16.mxu0 0
  %168 = vmatpush1.bf16.msra.mxu0 0
  %169 = vmatprep.subr.bf16.mxu0 0
  %170 = vmatpush1.bf16.msra.mxu0 0
  %171 = vmatprep.subr.bf16.mxu0 0
  %172 = vmatpush1.bf16.msra.mxu0 0
  %173 = vmatprep.subr.bf16.mxu0 0
  %174 = vmatpush1.bf16.msra.mxu0 0
  %175 = vmatprep.subr.bf16.mxu0 0
  %176 = vmatpush1.bf16.msra.mxu0 0
  %177 = vmatprep.subr.bf16.mxu0 0
  %178 = vmatpush1.bf16.msra.mxu0 0
  %179 = vmatprep.mubr.bf16.mxu0 0
  %180 = vmatmul.mubr.bf16.gmra.mrb[0].mxu0 %v132
  %v181 = vpop.f32.mrb[0].mxu0
  %v182 = vadd.f32 %v111, %v181
  %v183 = vpop.f32.mrb[0].mxu0
  %v184 = vadd.f32 %v115, %v183
  %v185 = vpop.f32.mrb[0].mxu0
  %v186 = vadd.f32 %v111, %v185
  %v187 = vpop.f32.mrb[0].mxu0
  %v188 = vadd.f32 %v115, %v187
  %189 = vmatprep.mubr.bf16.mxu0 0
  %190 = vmatmul.mubr.bf16.gmra.mrb[0].mxu0 %v135
  %v191 = vpop.f32.mrb[0].mxu0
  %v192 = vadd.f32 %v111, %v191
  %v193 = vpop.f32.mrb[0].mxu0
  %v194 = vadd.f32 %v115, %v193
  %v195 = vpop.f32.mrb[0].mxu0
  %v196 = vadd.f32 %v111, %v195
  %v197 = vpop.f32.mrb[0].mxu0
  %v198 = vadd.f32 %v115, %v197
  %199 = vdwg.mxu0
  %200 = vmatprep.subr.bf16.mxu0 0
  %201 = vmatpush1.bf16.msra.mxu0 %v145
  %202 = vmatprep.subr.bf16.mxu0 0
  %203 = vmatpush1.bf16.msra.mxu0 0
  %204 = vmatprep.subr.bf16.mxu0 0
  %205 = vmatpush1.bf16.msra.mxu0 0
  %206 = vmatprep.subr.bf16.mxu0 0
  %207 = vmatpush1.bf16.msra.mxu0 0
  %208 = vmatprep.subr.bf16.mxu0 0
  %209 = vmatpush1.bf16.msra.mxu0 0
  %210 = vmatprep.subr.bf16.mxu0 0
  %211 = vmatpush1.bf16.msra.mxu0 0
  %212 = vmatprep.subr.bf16.mxu0 0
  %213 = vmatpush1.bf16.msra.mxu0 0
  %214 = vmatprep.subr.bf16.mxu0 0
  %215 = vmatpush1.bf16.msra.mxu0 0
  %216 = vmatprep.subr.bf16.mxu0 0
  %217 = vmatpush1.bf16.msra.mxu0 0
  %218 = vmatprep.subr.bf16.mxu0 0
  %219 = vmatpush1.bf16.msra.mxu0 0
  %220 = vmatprep.subr.bf16.mxu0 0
  %221 = vmatpush1.bf16.msra.mxu0 0
  %222 = vmatprep.subr.bf16.mxu0 0
  %223 = vmatpush1.bf16.msra.mxu0 0
  %224 = vmatprep.subr.bf16.mxu0 0
  %225 = vmatpush1.bf16.msra.mxu0 0
  %226 = vmatprep.subr.bf16.mxu0 0
  %227 = vmatpush1.bf16.msra.mxu0 0
  %228 = vmatprep.subr.bf16.mxu0 0
  %229 = vmatpush1.bf16.msra.mxu0 0
  %230 = vmatprep.subr.bf16.mxu0 0
  %231 = vmatpush1.bf16.msra.mxu0 0
  %232 = vmatprep.mubr.bf16.mxu0 0
  %233 = vmatmul.mubr.bf16.gmra.mrb[0].mxu0 %v132
  %v234 = vpop.f32.mrb[0].mxu0
  %v235 = vadd.f32 %v119, %v234
  %v236 = vpop.f32.mrb[0].mxu0
  %v237 = vpop.f32.mrb[0].mxu0
  %v238 = vadd.f32 %v119, %v237
  %v239 = vpop.f32.mrb[0].mxu0
  %240 = vmatprep.mubr.bf16.mxu0 0
  %241 = vmatmul.mubr.bf16.gmra.mrb[0].mxu0 %v135
  %v242 = vpop.f32.mrb[0].mxu0
  %v243 = vadd.f32 %v119, %v242
  %v244 = vpop.f32.mrb[0].mxu0
  %v245 = vpop.f32.mrb[0].mxu0
  %v246 = vadd.f32 %v119, %v245
  %v247 = vpop.f32.mrb[0].mxu0
  %248 = vdwg.mxu0
  %v249 = vpack.c.bf16 %v186, %v182
  %v250 = vpack.c.bf16 %v188, %v184
  %v251 = vpack.c.bf16 %v238, %v235
  %v252 = vpack.c.bf16 %v196, %v192
  %v253 = vpack.c.bf16 %v198, %v194
  %v254 = vpack.c.bf16 %v246, %v243
  %v255 = vld [vmem:[%s3] sm:$0xf]
  %v256 = vld [vmem:[%s3 + $0x4] sm:$0xf]
  %v257 = vld [vmem:[%s3 + $0x8] sm:$0xf]
  %v258 = vld [vmem:[%s3 + $0xc] sm:$0xf]
  %v259 = vld [vmem:[%s3 + $0x10] sm:$0xf]
  %v260 = vld [vmem:[%s3 + $0x14] sm:$0xf]
  %v261 = vld [vmem:[%s3 + $0x18] sm:$0xf]
  %v262 = vld [vmem:[%s3 + $0x1c] sm:$0xf]
  %v263 = vld [vmem:[%s3 + $0x20] sm:$0xf]
  %v264 = vld [vmem:[%s3 + $0x24] sm:$0xf]
  %v265 = vld [vmem:[%s3 + $0x28] sm:$0xf]
  %v266 = vld [vmem:[%s3 + $0x2c] sm:$0xf]
  %v267 = vld [vmem:[%s3 + $0x30] sm:$0xf]
  %v268 = vld [vmem:[%s3 + $0x34] sm:$0xf]
  %v269 = vld [vmem:[%s3 + $0x38] sm:$0xf]
  %v270 = vld [vmem:[%s3 + $0x3c] sm:$0xf]
  %vm271 = vcmask 261120
  %v273 = vsel %vm271, %v249, 0
  %v276 = vsel %vm271, %v250, 0
  %278 = vmatprep.subr.bf16.mxu0 0
  %279 = vmatpush1.bf16.xpose.msra.mxu0 %v276
  %280 = vmatprep.subr.bf16.mxu0 0
  %281 = vmatpush1.bf16.xpose.msra.mxu0 0
  %282 = vmatprep.subr.bf16.mxu0 0
  %283 = vmatpush1.bf16.xpose.msra.mxu0 0
  %284 = vmatprep.subr.bf16.mxu0 0
  %285 = vmatpush1.bf16.xpose.msra.mxu0 0
  %286 = vmatprep.subr.bf16.mxu0 0
  %287 = vmatpush1.bf16.xpose.msra.mxu0 0
  %288 = vmatprep.subr.bf16.mxu0 0
  %289 = vmatpush1.bf16.xpose.msra.mxu0 0
  %290 = vmatprep.subr.bf16.mxu0 0
  %291 = vmatpush1.bf16.xpose.msra.mxu0 0
  %292 = vmatprep.subr.bf16.mxu0 0
  %293 = vmatpush1.bf16.xpose.msra.mxu0 0
  %294 = vmatprep.subr.bf16.mxu0 0
  %295 = vmatpush1.bf16.xpose.msra.mxu0 0
  %296 = vmatprep.subr.bf16.mxu0 0
  %297 = vmatpush1.bf16.xpose.msra.mxu0 0
  %298 = vmatprep.subr.bf16.mxu0 0
  %299 = vmatpush1.bf16.xpose.msra.mxu0 0
  %300 = vmatprep.subr.bf16.mxu0 0
  %301 = vmatpush1.bf16.xpose.msra.mxu0 0
  %302 = vmatprep.subr.bf16.mxu0 0
  %303 = vmatpush1.bf16.xpose.msra.mxu0 0
  %304 = vmatprep.subr.bf16.mxu0 0
  %305 = vmatpush1.bf16.xpose.msra.mxu0 0
  %306 = vmatprep.subr.bf16.mxu0 0
  %307 = vmatpush1.bf16.xpose.msra.mxu0 0
  %308 = vmatprep.subr.bf16.mxu0 0
  %309 = vmatpush1.bf16.xpose.msra.mxu0 0
  %310 = vmatprep.mubr.bf16.mxu0 0
  %311 = vmatmul.mubr.bf16.gmra.mrb[0].mxu0 %v273
  %v312 = vpop.f32.mrb[0].mxu0
  %v313 = vadd.f32 0.0, %v312
  %v314 = vpop.f32.mrb[0].mxu0
  %v315 = vpop.f32.mrb[0].mxu0
  %v316 = vadd.f32 0.0, %v315
  %v317 = vpop.f32.mrb[0].mxu0
  %318 = vdwg.mxu0
  %v320 = vsel %vm271, %v252, 0
  %v323 = vsel %vm271, %v253, 0
  %325 = vmatprep.subr.bf16.mxu0 0
  %326 = vmatpush1.bf16.xpose.msra.mxu0 %v323
  %327 = vmatprep.subr.bf16.mxu0 0
  %328 = vmatpush1.bf16.xpose.msra.mxu0 0
  %329 = vmatprep.subr.bf16.mxu0 0
  %330 = vmatpush1.bf16.xpose.msra.mxu0 0
  %331 = vmatprep.subr.bf16.mxu0 0
  %332 = vmatpush1.bf16.xpose.msra.mxu0 0
  %333 = vmatprep.subr.bf16.mxu0 0
  %334 = vmatpush1.bf16.xpose.msra.mxu0 0
  %335 = vmatprep.subr.bf16.mxu0 0
  %336 = vmatpush1.bf16.xpose.msra.mxu0 0
  %337 = vmatprep.subr.bf16.mxu0 0
  %338 = vmatpush1.bf16.xpose.msra.mxu0 0
  %339 = vmatprep.subr.bf16.mxu0 0
  %340 = vmatpush1.bf16.xpose.msra.mxu0 0
  %341 = vmatprep.subr.bf16.mxu0 0
  %342 = vmatpush1.bf16.xpose.msra.mxu0 0
  %343 = vmatprep.subr.bf16.mxu0 0
  %344 = vmatpush1.bf16.xpose.msra.mxu0 0
  %345 = vmatprep.subr.bf16.mxu0 0
  %346 = vmatpush1.bf16.xpose.msra.mxu0 0
  %347 = vmatprep.subr.bf16.mxu0 0
  %348 = vmatpush1.bf16.xpose.msra.mxu0 0
  %349 = vmatprep.subr.bf16.mxu0 0
  %350 = vmatpush1.bf16.xpose.msra.mxu0 0
  %351 = vmatprep.subr.bf16.mxu0 0
  %352 = vmatpush1.bf16.xpose.msra.mxu0 0
  %353 = vmatprep.subr.bf16.mxu0 0
  %354 = vmatpush1.bf16.xpose.msra.mxu0 0
  %355 = vmatprep.subr.bf16.mxu0 0
  %356 = vmatpush1.bf16.xpose.msra.mxu0 0
  %357 = vmatprep.mubr.bf16.mxu0 0
  %358 = vmatmul.mubr.bf16.gmra.mrb[0].mxu0 %v320
  %v359 = vpop.f32.mrb[0].mxu0
  %v360 = vadd.f32 0.0, %v359
  %v361 = vpop.f32.mrb[0].mxu0
  %v362 = vpop.f32.mrb[0].mxu0
  %v363 = vadd.f32 0.0, %v362
  %v364 = vpop.f32.mrb[0].mxu0
  %365 = vdwg.mxu0
  %vm366 = vcmask 130048
  %v367 = vsel %vm366, %v313, -inf
  %368 = vmax.xlane.f32.xlu0 %v367
  %v369 = vpop.xlane.xlu0 %368
  %v370 = vsel %vm366, %v316, -inf
  %371 = vmax.xlane.f32.xlu0 %v370
  %v372 = vpop.xlane.xlu0 %371
  %v373 = vsel %vm366, %v360, -inf
  %374 = vmax.xlane.f32.xlu0 %v373
  %v375 = vpop.xlane.xlu0 %374
  %v376 = vsel %vm366, %v363, -inf
  %377 = vmax.xlane.f32.xlu0 %v376
  %v378 = vpop.xlane.xlu0 %377
  %v379 = vsub.f32 %v313, %v369
  %v380 = vsub.f32 %v316, %v372
  %v381 = vsub.f32 %v360, %v375
  %v382 = vsub.f32 %v363, %v378
  %v383 = vmul.f32 %v379, 1.442695
  %v384 = vpow.pop %v383
  %v385 = vmul.f32 %v380, 1.442695
  %v386 = vpow.pop %v385
  %v387 = vmul.f32 %v381, 1.442695
  %v388 = vpow.pop %v387
  %v389 = vmul.f32 %v382, 1.442695
  %v390 = vpow.pop %v389
  %v391 = vsel %vm366, %v384, 0.0
  %392 = vadd.xlane.f32.xlu0 %v391
  %v393 = vpop.xlane.xlu0 %392
  %v394 = vsel %vm366, %v386, 0.0
  %395 = vadd.xlane.f32.xlu0 %v394
  %v396 = vpop.xlane.xlu0 %395
  %v397 = vsel %vm366, %v388, 0.0
  %398 = vadd.xlane.f32.xlu0 %v397
  %v399 = vpop.xlane.xlu0 %398
  %v400 = vsel %vm366, %v390, 0.0
  %401 = vadd.xlane.f32.xlu0 %v400
  %v402 = vpop.xlane.xlu0 %401
  %v403 = vpack.c.bf16 %v386, %v384
  %v404 = vpack.c.bf16 %v390, %v388
  %v406 = vsel %vm366, %v403, 0
  %408 = vmatprep.subr.bf16.mxu0 0
  %409 = vmatpush1.bf16.msra.mxu0 %v251
  %410 = vmatprep.subr.bf16.mxu0 0
  %411 = vmatpush1.bf16.msra.mxu0 0
  %412 = vmatprep.subr.bf16.mxu0 0
  %413 = vmatpush1.bf16.msra.mxu0 0
  %414 = vmatprep.subr.bf16.mxu0 0
  %415 = vmatpush1.bf16.msra.mxu0 0
  %416 = vmatprep.subr.bf16.mxu0 0
  %417 = vmatpush1.bf16.msra.mxu0 0
  %418 = vmatprep.subr.bf16.mxu0 0
  %419 = vmatpush1.bf16.msra.mxu0 0
  %420 = vmatprep.subr.bf16.mxu0 0
  %421 = vmatpush1.bf16.msra.mxu0 0
  %422 = vmatprep.subr.bf16.mxu0 0
  %423 = vmatpush1.bf16.msra.mxu0 0
  %424 = vmatprep.subr.bf16.mxu0 0
  %425 = vmatpush1.bf16.msra.mxu0 0
  %426 = vmatprep.subr.bf16.mxu0 0
  %427 = vmatpush1.bf16.msra.mxu0 0
  %428 = vmatprep.subr.bf16.mxu0 0
  %429 = vmatpush1.bf16.msra.mxu0 0
  %430 = vmatprep.subr.bf16.mxu0 0
  %431 = vmatpush1.bf16.msra.mxu0 0
  %432 = vmatprep.subr.bf16.mxu0 0
  %433 = vmatpush1.bf16.msra.mxu0 0
  %434 = vmatprep.subr.bf16.mxu0 0
  %435 = vmatpush1.bf16.msra.mxu0 0
  %436 = vmatprep.subr.bf16.mxu0 0
  %437 = vmatpush1.bf16.msra.mxu0 0
  %438 = vmatprep.subr.bf16.mxu0 0
  %439 = vmatpush1.bf16.msra.mxu0 0
  %440 = vmatprep.mubr.bf16.mxu0 0
  %441 = vmatmul.mubr.bf16.gmra.mrb[0].mxu0 %v406
  %v442 = vpop.f32.mrb[0].mxu0
  %v443 = vadd.f32 0.0, %v442
  %v444 = vpop.f32.mrb[0].mxu0
  %v445 = vpop.f32.mrb[0].mxu0
  %v446 = vadd.f32 0.0, %v445
  %v447 = vpop.f32.mrb[0].mxu0
  %448 = vdwg.mxu0
  %v450 = vsel %vm366, %v404, 0
  %452 = vmatprep.subr.bf16.mxu0 0
  %453 = vmatpush1.bf16.msra.mxu0 %v254
  %454 = vmatprep.subr.bf16.mxu0 0
  %455 = vmatpush1.bf16.msra.mxu0 0
  %456 = vmatprep.subr.bf16.mxu0 0
  %457 = vmatpush1.bf16.msra.mxu0 0
  %458 = vmatprep.subr.bf16.mxu0 0
  %459 = vmatpush1.bf16.msra.mxu0 0
  %460 = vmatprep.subr.bf16.mxu0 0
  %461 = vmatpush1.bf16.msra.mxu0 0
  %462 = vmatprep.subr.bf16.mxu0 0
  %463 = vmatpush1.bf16.msra.mxu0 0
  %464 = vmatprep.subr.bf16.mxu0 0
  %465 = vmatpush1.bf16.msra.mxu0 0
  %466 = vmatprep.subr.bf16.mxu0 0
  %467 = vmatpush1.bf16.msra.mxu0 0
  %468 = vmatprep.subr.bf16.mxu0 0
  %469 = vmatpush1.bf16.msra.mxu0 0
  %470 = vmatprep.subr.bf16.mxu0 0
  %471 = vmatpush1.bf16.msra.mxu0 0
  %472 = vmatprep.subr.bf16.mxu0 0
  %473 = vmatpush1.bf16.msra.mxu0 0
  %474 = vmatprep.subr.bf16.mxu0 0
  %475 = vmatpush1.bf16.msra.mxu0 0
  %476 = vmatprep.subr.bf16.mxu0 0
  %477 = vmatpush1.bf16.msra.mxu0 0
  %478 = vmatprep.subr.bf16.mxu0 0
  %479 = vmatpush1.bf16.msra.mxu0 0
  %480 = vmatprep.subr.bf16.mxu0 0
  %481 = vmatpush1.bf16.msra.mxu0 0
  %482 = vmatprep.subr.bf16.mxu0 0
  %483 = vmatpush1.bf16.msra.mxu0 0
  %484 = vmatprep.mubr.bf16.mxu0 0
  %485 = vmatmul.mubr.bf16.gmra.mrb[0].mxu0 %v450
  %v486 = vpop.f32.mrb[0].mxu0
  %v487 = vadd.f32 0.0, %v486
  %v488 = vpop.f32.mrb[0].mxu0
  %v489 = vpop.f32.mrb[0].mxu0
  %v490 = vadd.f32 0.0, %v489
  %v491 = vpop.f32.mrb[0].mxu0
  %492 = vdwg.mxu0
  %v493 = vrcp.pop %v393
  %v494 = vrcp.pop %v396
  %v495 = vrcp.pop %v399
  %v496 = vrcp.pop %v402
  %v497 = vmul.f32 %v443, %v493
  %v498 = vmul.f32 %v446, %v494
  %v499 = vmul.f32 %v487, %v495
  %v500 = vmul.f32 %v490, %v496
  %v501 = vpack.c.bf16 %v498, %v497
  %v502 = vpack.c.bf16 %v500, %v499
  %504 = vrot.lane.b32.xlu0 %v249, 96
  %v505 = vpop.permute.xlu0 %504
  %507 = vrot.lane.b32.xlu0 %v250, 96
  %v508 = vpop.permute.xlu0 %507
  %v510 = vsel %vm271, %v505, 0
  %v513 = vsel %vm271, %v508, 0
  %515 = vmatprep.subr.bf16.mxu0 0
  %516 = vmatpush1.bf16.xpose.msra.mxu0 %v513
  %517 = vmatprep.subr.bf16.mxu0 0
  %518 = vmatpush1.bf16.xpose.msra.mxu0 0
  %519 = vmatprep.subr.bf16.mxu0 0
  %520 = vmatpush1.bf16.xpose.msra.mxu0 0
  %521 = vmatprep.subr.bf16.mxu0 0
  %522 = vmatpush1.bf16.xpose.msra.mxu0 0
  %523 = vmatprep.subr.bf16.mxu0 0
  %524 = vmatpush1.bf16.xpose.msra.mxu0 0
  %525 = vmatprep.subr.bf16.mxu0 0
  %526 = vmatpush1.bf16.xpose.msra.mxu0 0
  %527 = vmatprep.subr.bf16.mxu0 0
  %528 = vmatpush1.bf16.xpose.msra.mxu0 0
  %529 = vmatprep.subr.bf16.mxu0 0
  %530 = vmatpush1.bf16.xpose.msra.mxu0 0
  %531 = vmatprep.subr.bf16.mxu0 0
  %532 = vmatpush1.bf16.xpose.msra.mxu0 0
  %533 = vmatprep.subr.bf16.mxu0 0
  %534 = vmatpush1.bf16.xpose.msra.mxu0 0
  %535 = vmatprep.subr.bf16.mxu0 0
  %536 = vmatpush1.bf16.xpose.msra.mxu0 0
  %537 = vmatprep.subr.bf16.mxu0 0
  %538 = vmatpush1.bf16.xpose.msra.mxu0 0
  %539 = vmatprep.subr.bf16.mxu0 0
  %540 = vmatpush1.bf16.xpose.msra.mxu0 0
  %541 = vmatprep.subr.bf16.mxu0 0
  %542 = vmatpush1.bf16.xpose.msra.mxu0 0
  %543 = vmatprep.subr.bf16.mxu0 0
  %544 = vmatpush1.bf16.xpose.msra.mxu0 0
  %545 = vmatprep.subr.bf16.mxu0 0
  %546 = vmatpush1.bf16.xpose.msra.mxu0 0
  %547 = vmatprep.mubr.bf16.mxu0 0
  %548 = vmatmul.mubr.bf16.gmra.mrb[0].mxu0 %v510
  %v549 = vpop.f32.mrb[0].mxu0
  %v550 = vadd.f32 0.0, %v549
  %v551 = vpop.f32.mrb[0].mxu0
  %v552 = vpop.f32.mrb[0].mxu0
  %v553 = vadd.f32 0.0, %v552
  %v554 = vpop.f32.mrb[0].mxu0
  %555 = vdwg.mxu0
  %557 = vrot.lane.b32.xlu0 %v252, 96
  %v558 = vpop.permute.xlu0 %557
  %560 = vrot.lane.b32.xlu0 %v253, 96
  %v561 = vpop.permute.xlu0 %560
  %v563 = vsel %vm271, %v558, 0
  %v566 = vsel %vm271, %v561, 0
  %568 = vmatprep.subr.bf16.mxu0 0
  %569 = vmatpush1.bf16.xpose.msra.mxu0 %v566
  %570 = vmatprep.subr.bf16.mxu0 0
  %571 = vmatpush1.bf16.xpose.msra.mxu0 0
  %572 = vmatprep.subr.bf16.mxu0 0
  %573 = vmatpush1.bf16.xpose.msra.mxu0 0
  %574 = vmatprep.subr.bf16.mxu0 0
  %575 = vmatpush1.bf16.xpose.msra.mxu0 0
  %576 = vmatprep.subr.bf16.mxu0 0
  %577 = vmatpush1.bf16.xpose.msra.mxu0 0
  %578 = vmatprep.subr.bf16.mxu0 0
  %579 = vmatpush1.bf16.xpose.msra.mxu0 0
  %580 = vmatprep.subr.bf16.mxu0 0
  %581 = vmatpush1.bf16.xpose.msra.mxu0 0
  %582 = vmatprep.subr.bf16.mxu0 0
  %583 = vmatpush1.bf16.xpose.msra.mxu0 0
  %584 = vmatprep.subr.bf16.mxu0 0
  %585 = vmatpush1.bf16.xpose.msra.mxu0 0
  %586 = vmatprep.subr.bf16.mxu0 0
  %587 = vmatpush1.bf16.xpose.msra.mxu0 0
  %588 = vmatprep.subr.bf16.mxu0 0
  %589 = vmatpush1.bf16.xpose.msra.mxu0 0
  %590 = vmatprep.subr.bf16.mxu0 0
  %591 = vmatpush1.bf16.xpose.msra.mxu0 0
  %592 = vmatprep.subr.bf16.mxu0 0
  %593 = vmatpush1.bf16.xpose.msra.mxu0 0
  %594 = vmatprep.subr.bf16.mxu0 0
  %595 = vmatpush1.bf16.xpose.msra.mxu0 0
  %596 = vmatprep.subr.bf16.mxu0 0
  %597 = vmatpush1.bf16.xpose.msra.mxu0 0
  %598 = vmatprep.subr.bf16.mxu0 0
  %599 = vmatpush1.bf16.xpose.msra.mxu0 0
  %600 = vmatprep.mubr.bf16.mxu0 0
  %601 = vmatmul.mubr.bf16.gmra.mrb[0].mxu0 %v563
  %v602 = vpop.f32.mrb[0].mxu0
  %v603 = vadd.f32 0.0, %v602
  %v604 = vpop.f32.mrb[0].mxu0
  %v605 = vpop.f32.mrb[0].mxu0
  %v606 = vadd.f32 0.0, %v605
  %v607 = vpop.f32.mrb[0].mxu0
  %608 = vdwg.mxu0
  %v609 = vsel %vm366, %v550, -inf
  %610 = vmax.xlane.f32.xlu0 %v609
  %v611 = vpop.xlane.xlu0 %610
  %v612 = vsel %vm366, %v553, -inf
  %613 = vmax.xlane.f32.xlu0 %v612
  %v614 = vpop.xlane.xlu0 %613
  %v615 = vsel %vm366, %v603, -inf
  %616 = vmax.xlane.f32.xlu0 %v615
  %v617 = vpop.xlane.xlu0 %616
  %v618 = vsel %vm366, %v606, -inf
  %619 = vmax.xlane.f32.xlu0 %v618
  %v620 = vpop.xlane.xlu0 %619
  %v621 = vsub.f32 %v550, %v611
  %v622 = vsub.f32 %v553, %v614
  %v623 = vsub.f32 %v603, %v617
  %v624 = vsub.f32 %v606, %v620
  %v625 = vmul.f32 %v621, 1.442695
  %v626 = vpow.pop %v625
  %v627 = vmul.f32 %v622, 1.442695
  %v628 = vpow.pop %v627
  %v629 = vmul.f32 %v623, 1.442695
  %v630 = vpow.pop %v629
  %v631 = vmul.f32 %v624, 1.442695
  %v632 = vpow.pop %v631
  %v633 = vsel %vm366, %v626, 0.0
  %634 = vadd.xlane.f32.xlu0 %v633
  %v635 = vpop.xlane.xlu0 %634
  %v636 = vsel %vm366, %v628, 0.0
  %637 = vadd.xlane.f32.xlu0 %v636
  %v638 = vpop.xlane.xlu0 %637
  %v639 = vsel %vm366, %v630, 0.0
  %640 = vadd.xlane.f32.xlu0 %v639
  %v641 = vpop.xlane.xlu0 %640
  %v642 = vsel %vm366, %v632, 0.0
  %643 = vadd.xlane.f32.xlu0 %v642
  %v644 = vpop.xlane.xlu0 %643
  %v645 = vpack.c.bf16 %v628, %v626
  %v646 = vpack.c.bf16 %v632, %v630
  %648 = vrot.lane.b32.xlu0 %v251, 96
  %v649 = vpop.permute.xlu0 %648
  %v652 = vsel %vm366, %v645, 0
  %654 = vmatprep.subr.bf16.mxu0 0
  %655 = vmatpush1.bf16.msra.mxu0 %v649
  %656 = vmatprep.subr.bf16.mxu0 0
  %657 = vmatpush1.bf16.msra.mxu0 0
  %658 = vmatprep.subr.bf16.mxu0 0
  %659 = vmatpush1.bf16.msra.mxu0 0
  %660 = vmatprep.subr.bf16.mxu0 0
  %661 = vmatpush1.bf16.msra.mxu0 0
  %662 = vmatprep.subr.bf16.mxu0 0
  %663 = vmatpush1.bf16.msra.mxu0 0
  %664 = vmatprep.subr.bf16.mxu0 0
  %665 = vmatpush1.bf16.msra.mxu0 0
  %666 = vmatprep.subr.bf16.mxu0 0
  %667 = vmatpush1.bf16.msra.mxu0 0
  %668 = vmatprep.subr.bf16.mxu0 0
  %669 = vmatpush1.bf16.msra.mxu0 0
  %670 = vmatprep.subr.bf16.mxu0 0
  %671 = vmatpush1.bf16.msra.mxu0 0
  %672 = vmatprep.subr.bf16.mxu0 0
  %673 = vmatpush1.bf16.msra.mxu0 0
  %674 = vmatprep.subr.bf16.mxu0 0
  %675 = vmatpush1.bf16.msra.mxu0 0
  %676 = vmatprep.subr.bf16.mxu0 0
  %677 = vmatpush1.bf16.msra.mxu0 0
  %678 = vmatprep.subr.bf16.mxu0 0
  %679 = vmatpush1.bf16.msra.mxu0 0
  %680 = vmatprep.subr.bf16.mxu0 0
  %681 = vmatpush1.bf16.msra.mxu0 0
  %682 = vmatprep.subr.bf16.mxu0 0
  %683 = vmatpush1.bf16.msra.mxu0 0
  %684 = vmatprep.subr.bf16.mxu0 0
  %685 = vmatpush1.bf16.msra.mxu0 0
  %686 = vmatprep.mubr.bf16.mxu0 0
  %687 = vmatmul.mubr.bf16.gmra.mrb[0].mxu0 %v652
  %v688 = vpop.f32.mrb[0].mxu0
  %v689 = vadd.f32 0.0, %v688
  %v690 = vpop.f32.mrb[0].mxu0
  %v691 = vpop.f32.mrb[0].mxu0
  %v692 = vadd.f32 0.0, %v691
  %v693 = vpop.f32.mrb[0].mxu0
  %694 = vdwg.mxu0
  %696 = vrot.lane.b32.xlu0 %v254, 96
  %v697 = vpop.permute.xlu0 %696
  %v700 = vsel %vm366, %v646, 0
  %702 = vmatprep.subr.bf16.mxu0 0
  %703 = vmatpush1.bf16.msra.mxu0 %v697
  %704 = vmatprep.subr.bf16.mxu0 0
  %705 = vmatpush1.bf16.msra.mxu0 0
  %706 = vmatprep.subr.bf16.mxu0 0
  %707 = vmatpush1.bf16.msra.mxu0 0
  %708 = vmatprep.subr.bf16.mxu0 0
  %709 = vmatpush1.bf16.msra.mxu0 0
  %710 = vmatprep.subr.bf16.mxu0 0
  %711 = vmatpush1.bf16.msra.mxu0 0
  %712 = vmatprep.subr.bf16.mxu0 0
  %713 = vmatpush1.bf16.msra.mxu0 0
  %714 = vmatprep.subr.bf16.mxu0 0
  %715 = vmatpush1.bf16.msra.mxu0 0
  %716 = vmatprep.subr.bf16.mxu0 0
  %717 = vmatpush1.bf16.msra.mxu0 0
  %718 = vmatprep.subr.bf16.mxu0 0
  %719 = vmatpush1.bf16.msra.mxu0 0
  %720 = vmatprep.subr.bf16.mxu0 0
  %721 = vmatpush1.bf16.msra.mxu0 0
  %722 = vmatprep.subr.bf16.mxu0 0
  %723 = vmatpush1.bf16.msra.mxu0 0
  %724 = vmatprep.subr.bf16.mxu0 0
  %725 = vmatpush1.bf16.msra.mxu0 0
  %726 = vmatprep.subr.bf16.mxu0 0
  %727 = vmatpush1.bf16.msra.mxu0 0
  %728 = vmatprep.subr.bf16.mxu0 0
  %729 = vmatpush1.bf16.msra.mxu0 0
  %730 = vmatprep.subr.bf16.mxu0 0
  %731 = vmatpush1.bf16.msra.mxu0 0
  %732 = vmatprep.subr.bf16.mxu0 0
  %733 = vmatpush1.bf16.msra.mxu0 0
  %734 = vmatprep.mubr.bf16.mxu0 0
  %735 = vmatmul.mubr.bf16.gmra.mrb[0].mxu0 %v700
  %v736 = vpop.f32.mrb[0].mxu0
  %v737 = vadd.f32 0.0, %v736
  %v738 = vpop.f32.mrb[0].mxu0
  %v739 = vpop.f32.mrb[0].mxu0
  %v740 = vadd.f32 0.0, %v739
  %v741 = vpop.f32.mrb[0].mxu0
  %742 = vdwg.mxu0
  %v743 = vrcp.pop %v635
  %v744 = vrcp.pop %v638
  %v745 = vrcp.pop %v641
  %v746 = vrcp.pop %v644
  %v747 = vmul.f32 %v689, %v743
  %v748 = vmul.f32 %v692, %v744
  %v749 = vmul.f32 %v737, %v745
  %v750 = vmul.f32 %v740, %v746
  %v751 = vpack.c.bf16 %v748, %v747
  %v752 = vpack.c.bf16 %v750, %v749
  %v757 = vunpack.c.l.b16 %v259
  %v758 = vunpack.c.l.b16 %v260
  %v759 = vunpack.c.l.b16 %v261
  %v760 = vunpack.c.l.b16 %v262
  %v761 = vpack.c.b16 %v758, %v757
  %v762 = vpack.c.b16 %v760, %v759
  %v766 = vsel %vm271, %v751, 0
  %v769 = vsel %vm271, %v752, 0
  %771 = vmatprep.subr.bf16.mxu0 0
  %772 = vmatpush1.bf16.msra.mxu0 %v761
  %773 = vmatprep.subr.bf16.mxu0 0
  %774 = vmatpush1.bf16.msra.mxu0 %v762
  %775 = vmatprep.subr.bf16.mxu0 0
  %776 = vmatpush1.bf16.msra.mxu0 0
  %777 = vmatprep.subr.bf16.mxu0 0
  %778 = vmatpush1.bf16.msra.mxu0 0
  %779 = vmatprep.subr.bf16.mxu0 0
  %780 = vmatpush1.bf16.msra.mxu0 0
  %781 = vmatprep.subr.bf16.mxu0 0
  %782 = vmatpush1.bf16.msra.mxu0 0
  %783 = vmatprep.subr.bf16.mxu0 0
  %784 = vmatpush1.bf16.msra.mxu0 0
  %785 = vmatprep.subr.bf16.mxu0 0
  %786 = vmatpush1.bf16.msra.mxu0 0
  %787 = vmatprep.subr.bf16.mxu0 0
  %788 = vmatpush1.bf16.msra.mxu0 0
  %789 = vmatprep.subr.bf16.mxu0 0
  %790 = vmatpush1.bf16.msra.mxu0 0
  %791 = vmatprep.subr.bf16.mxu0 0
  %792 = vmatpush1.bf16.msra.mxu0 0
  %793 = vmatprep.subr.bf16.mxu0 0
  %794 = vmatpush1.bf16.msra.mxu0 0
  %795 = vmatprep.subr.bf16.mxu0 0
  %796 = vmatpush1.bf16.msra.mxu0 0
  %797 = vmatprep.subr.bf16.mxu0 0
  %798 = vmatpush1.bf16.msra.mxu0 0
  %799 = vmatprep.subr.bf16.mxu0 0
  %800 = vmatpush1.bf16.msra.mxu0 0
  %801 = vmatprep.subr.bf16.mxu0 0
  %802 = vmatpush1.bf16.msra.mxu0 0
  %803 = vmatprep.mubr.bf16.mxu0 0
  %804 = vmatmul.mubr.bf16.gmra.mrb[0].mxu0 %v766
  %v805 = vpop.f32.mrb[0].mxu0
  %v806 = vadd.f32 0.0, %v805
  %v807 = vpop.f32.mrb[0].mxu0
  %v808 = vpop.f32.mrb[0].mxu0
  %v809 = vadd.f32 0.0, %v808
  %v810 = vpop.f32.mrb[0].mxu0
  %811 = vmatprep.mubr.bf16.mxu0 0
  %812 = vmatmul.mubr.bf16.gmra.mrb[0].mxu0 %v769
  %v813 = vpop.f32.mrb[0].mxu0
  %v814 = vadd.f32 0.0, %v813
  %v815 = vpop.f32.mrb[0].mxu0
  %v816 = vpop.f32.mrb[0].mxu0
  %v817 = vadd.f32 0.0, %v816
  %v818 = vpop.f32.mrb[0].mxu0
  %819 = vdwg.mxu0
  %v824 = vunpack.c.l.b16 %v255
  %v825 = vunpack.c.l.b16 %v256
  %v826 = vunpack.c.l.b16 %v257
  %v827 = vunpack.c.l.b16 %v258
  %v828 = vpack.c.b16 %v825, %v824
  %v829 = vpack.c.b16 %v827, %v826
  %v833 = vsel %vm271, %v501, 0
  %v836 = vsel %vm271, %v502, 0
  %838 = vmatprep.subr.bf16.mxu0 0
  %839 = vmatpush1.bf16.msra.mxu0 %v828
  %840 = vmatprep.subr.bf16.mxu0 0
  %841 = vmatpush1.bf16.msra.mxu0 %v829
  %842 = vmatprep.subr.bf16.mxu0 0
  %843 = vmatpush1.bf16.msra.mxu0 0
  %844 = vmatprep.subr.bf16.mxu0 0
  %845 = vmatpush1.bf16.msra.mxu0 0
  %846 = vmatprep.subr.bf16.mxu0 0
  %847 = vmatpush1.bf16.msra.mxu0 0
  %848 = vmatprep.subr.bf16.mxu0 0
  %849 = vmatpush1.bf16.msra.mxu0 0
  %850 = vmatprep.subr.bf16.mxu0 0
  %851 = vmatpush1.bf16.msra.mxu0 0
  %852 = vmatprep.subr.bf16.mxu0 0
  %853 = vmatpush1.bf16.msra.mxu0 0
  %854 = vmatprep.subr.bf16.mxu0 0
  %855 = vmatpush1.bf16.msra.mxu0 0
  %856 = vmatprep.subr.bf16.mxu0 0
  %857 = vmatpush1.bf16.msra.mxu0 0
  %858 = vmatprep.subr.bf16.mxu0 0
  %859 = vmatpush1.bf16.msra.mxu0 0
  %860 = vmatprep.subr.bf16.mxu0 0
  %861 = vmatpush1.bf16.msra.mxu0 0
  %862 = vmatprep.subr.bf16.mxu0 0
  %863 = vmatpush1.bf16.msra.mxu0 0
  %864 = vmatprep.subr.bf16.mxu0 0
  %865 = vmatpush1.bf16.msra.mxu0 0
  %866 = vmatprep.subr.bf16.mxu0 0
  %867 = vmatpush1.bf16.msra.mxu0 0
  %868 = vmatprep.subr.bf16.mxu0 0
  %869 = vmatpush1.bf16.msra.mxu0 0
  %870 = vmatprep.mubr.bf16.mxu0 0
  %871 = vmatmul.mubr.bf16.gmra.mrb[0].mxu0 %v833
  %v872 = vpop.f32.mrb[0].mxu0
  %v873 = vadd.f32 %v806, %v872
  %v874 = vpop.f32.mrb[0].mxu0
  %v875 = vpop.f32.mrb[0].mxu0
  %v876 = vadd.f32 %v809, %v875
  %v877 = vpop.f32.mrb[0].mxu0
  %878 = vmatprep.mubr.bf16.mxu0 0
  %879 = vmatmul.mubr.bf16.gmra.mrb[0].mxu0 %v836
  %v880 = vpop.f32.mrb[0].mxu0
  %v881 = vadd.f32 %v814, %v880
  %v882 = vpop.f32.mrb[0].mxu0
  %v883 = vpop.f32.mrb[0].mxu0
  %v884 = vadd.f32 %v817, %v883
  %v885 = vpop.f32.mrb[0].mxu0
  %886 = vdwg.mxu0
  %887 = vrot.lane.b32.xlu0 %v249, 64
  %v888 = vpop.permute.xlu0 %887
  %889 = vrot.lane.b32.xlu0 %v250, 64
  %v890 = vpop.permute.xlu0 %889
  %v892 = vsel %vm271, %v888, 0
  %v895 = vsel %vm271, %v890, 0
  %897 = vmatprep.subr.bf16.mxu0 0
  %898 = vmatpush1.bf16.xpose.msra.mxu0 %v895
  %899 = vmatprep.subr.bf16.mxu0 0
  %900 = vmatpush1.bf16.xpose.msra.mxu0 0
  %901 = vmatprep.subr.bf16.mxu0 0
  %902 = vmatpush1.bf16.xpose.msra.mxu0 0
  %903 = vmatprep.subr.bf16.mxu0 0
  %904 = vmatpush1.bf16.xpose.msra.mxu0 0
  %905 = vmatprep.subr.bf16.mxu0 0
  %906 = vmatpush1.bf16.xpose.msra.mxu0 0
  %907 = vmatprep.subr.bf16.mxu0 0
  %908 = vmatpush1.bf16.xpose.msra.mxu0 0
  %909 = vmatprep.subr.bf16.mxu0 0
  %910 = vmatpush1.bf16.xpose.msra.mxu0 0
  %911 = vmatprep.subr.bf16.mxu0 0
  %912 = vmatpush1.bf16.xpose.msra.mxu0 0
  %913 = vmatprep.subr.bf16.mxu0 0
  %914 = vmatpush1.bf16.xpose.msra.mxu0 0
  %915 = vmatprep.subr.bf16.mxu0 0
  %916 = vmatpush1.bf16.xpose.msra.mxu0 0
  %917 = vmatprep.subr.bf16.mxu0 0
  %918 = vmatpush1.bf16.xpose.msra.mxu0 0
  %919 = vmatprep.subr.bf16.mxu0 0
  %920 = vmatpush1.bf16.xpose.msra.mxu0 0
  %921 = vmatprep.subr.bf16.mxu0 0
  %922 = vmatpush1.bf16.xpose.msra.mxu0 0
  %923 = vmatprep.subr.bf16.mxu0 0
  %924 = vmatpush1.bf16.xpose.msra.mxu0 0
  %925 = vmatprep.subr.bf16.mxu0 0
  %926 = vmatpush1.bf16.xpose.msra.mxu0 0
  %927 = vmatprep.subr.bf16.mxu0 0
  %928 = vmatpush1.bf16.xpose.msra.mxu0 0
  %929 = vmatprep.mubr.bf16.mxu0 0
  %930 = vmatmul.mubr.bf16.gmra.mrb[0].mxu0 %v892
  %v931 = vpop.f32.mrb[0].mxu0
  %v932 = vadd.f32 0.0, %v931
  %v933 = vpop.f32.mrb[0].mxu0
  %v934 = vpop.f32.mrb[0].mxu0
  %v935 = vadd.f32 0.0, %v934
  %v936 = vpop.f32.mrb[0].mxu0
  %937 = vdwg.mxu0
  %938 = vrot.lane.b32.xlu0 %v252, 64
  %v939 = vpop.permute.xlu0 %938
  %940 = vrot.lane.b32.xlu0 %v253, 64
  %v941 = vpop.permute.xlu0 %940
  %v943 = vsel %vm271, %v939, 0
  %v946 = vsel %vm271, %v941, 0
  %948 = vmatprep.subr.bf16.mxu0 0
  %949 = vmatpush1.bf16.xpose.msra.mxu0 %v946
  %950 = vmatprep.subr.bf16.mxu0 0
  %951 = vmatpush1.bf16.xpose.msra.mxu0 0
  %952 = vmatprep.subr.bf16.mxu0 0
  %953 = vmatpush1.bf16.xpose.msra.mxu0 0
  %954 = vmatprep.subr.bf16.mxu0 0
  %955 = vmatpush1.bf16.xpose.msra.mxu0 0
  %956 = vmatprep.subr.bf16.mxu0 0
  %957 = vmatpush1.bf16.xpose.msra.mxu0 0
  %958 = vmatprep.subr.bf16.mxu0 0
  %959 = vmatpush1.bf16.xpose.msra.mxu0 0
  %960 = vmatprep.subr.bf16.mxu0 0
  %961 = vmatpush1.bf16.xpose.msra.mxu0 0
  %962 = vmatprep.subr.bf16.mxu0 0
  %963 = vmatpush1.bf16.xpose.msra.mxu0 0
  %964 = vmatprep.subr.bf16.mxu0 0
  %965 = vmatpush1.bf16.xpose.msra.mxu0 0
  %966 = vmatprep.subr.bf16.mxu0 0
  %967 = vmatpush1.bf16.xpose.msra.mxu0 0
  %968 = vmatprep.subr.bf16.mxu0 0
  %969 = vmatpush1.bf16.xpose.msra.mxu0 0
  %970 = vmatprep.subr.bf16.mxu0 0
  %971 = vmatpush1.bf16.xpose.msra.mxu0 0
  %972 = vmatprep.subr.bf16.mxu0 0
  %973 = vmatpush1.bf16.xpose.msra.mxu0 0
  %974 = vmatprep.subr.bf16.mxu0 0
  %975 = vmatpush1.bf16.xpose.msra.mxu0 0
  %976 = vmatprep.subr.bf16.mxu0 0
  %977 = vmatpush1.bf16.xpose.msra.mxu0 0
  %978 = vmatprep.subr.bf16.mxu0 0
  %979 = vmatpush1.bf16.xpose.msra.mxu0 0
  %980 = vmatprep.mubr.bf16.mxu0 0
  %981 = vmatmul.mubr.bf16.gmra.mrb[0].mxu0 %v943
  %v982 = vpop.f32.mrb[0].mxu0
  %v983 = vadd.f32 0.0, %v982
  %v984 = vpop.f32.mrb[0].mxu0
  %v985 = vpop.f32.mrb[0].mxu0
  %v986 = vadd.f32 0.0, %v985
  %v987 = vpop.f32.mrb[0].mxu0
  %988 = vdwg.mxu0
  %v989 = vsel %vm366, %v932, -inf
  %990 = vmax.xlane.f32.xlu0 %v989
  %v991 = vpop.xlane.xlu0 %990
  %v992 = vsel %vm366, %v935, -inf
  %993 = vmax.xlane.f32.xlu0 %v992
  %v994 = vpop.xlane.xlu0 %993
  %v995 = vsel %vm366, %v983, -inf
  %996 = vmax.xlane.f32.xlu0 %v995
  %v997 = vpop.xlane.xlu0 %996
  %v998 = vsel %vm366, %v986, -inf
  %999 = vmax.xlane.f32.xlu0 %v998
  %v1000 = vpop.xlane.xlu0 %999
  %v1001 = vsub.f32 %v932, %v991
  %v1002 = vsub.f32 %v935, %v994
  %v1003 = vsub.f32 %v983, %v997
  %v1004 = vsub.f32 %v986, %v1000
  %v1005 = vmul.f32 %v1001, 1.442695
  %v1006 = vpow.pop %v1005
  %v1007 = vmul.f32 %v1002, 1.442695
  %v1008 = vpow.pop %v1007
  %v1009 = vmul.f32 %v1003, 1.442695
  %v1010 = vpow.pop %v1009
  %v1011 = vmul.f32 %v1004, 1.442695
  %v1012 = vpow.pop %v1011
  %v1013 = vsel %vm366, %v1006, 0.0
  %1014 = vadd.xlane.f32.xlu0 %v1013
  %v1015 = vpop.xlane.xlu0 %1014
  %v1016 = vsel %vm366, %v1008, 0.0
  %1017 = vadd.xlane.f32.xlu0 %v1016
  %v1018 = vpop.xlane.xlu0 %1017
  %v1019 = vsel %vm366, %v1010, 0.0
  %1020 = vadd.xlane.f32.xlu0 %v1019
  %v1021 = vpop.xlane.xlu0 %1020
  %v1022 = vsel %vm366, %v1012, 0.0
  %1023 = vadd.xlane.f32.xlu0 %v1022
  %v1024 = vpop.xlane.xlu0 %1023
  %v1025 = vpack.c.bf16 %v1008, %v1006
  %v1026 = vpack.c.bf16 %v1012, %v1010
  %1027 = vrot.lane.b32.xlu0 %v251, 64
  %v1028 = vpop.permute.xlu0 %1027
  %v1031 = vsel %vm366, %v1025, 0
  %1033 = vmatprep.subr.bf16.mxu0 0
  %1034 = vmatpush1.bf16.msra.mxu0 %v1028
  %1035 = vmatprep.subr.bf16.mxu0 0
  %1036 = vmatpush1.bf16.msra.mxu0 0
  %1037 = vmatprep.subr.bf16.mxu0 0
  %1038 = vmatpush1.bf16.msra.mxu0 0
  %1039 = vmatprep.subr.bf16.mxu0 0
  %1040 = vmatpush1.bf16.msra.mxu0 0
  %1041 = vmatprep.subr.bf16.mxu0 0
  %1042 = vmatpush1.bf16.msra.mxu0 0
  %1043 = vmatprep.subr.bf16.mxu0 0
  %1044 = vmatpush1.bf16.msra.mxu0 0
  %1045 = vmatprep.subr.bf16.mxu0 0
  %1046 = vmatpush1.bf16.msra.mxu0 0
  %1047 = vmatprep.subr.bf16.mxu0 0
  %1048 = vmatpush1.bf16.msra.mxu0 0
  %1049 = vmatprep.subr.bf16.mxu0 0
  %1050 = vmatpush1.bf16.msra.mxu0 0
  %1051 = vmatprep.subr.bf16.mxu0 0
  %1052 = vmatpush1.bf16.msra.mxu0 0
  %1053 = vmatprep.subr.bf16.mxu0 0
  %1054 = vmatpush1.bf16.msra.mxu0 0
  %1055 = vmatprep.subr.bf16.mxu0 0
  %1056 = vmatpush1.bf16.msra.mxu0 0
  %1057 = vmatprep.subr.bf16.mxu0 0
  %1058 = vmatpush1.bf16.msra.mxu0 0
  %1059 = vmatprep.subr.bf16.mxu0 0
  %1060 = vmatpush1.bf16.msra.mxu0 0
  %1061 = vmatprep.subr.bf16.mxu0 0
  %1062 = vmatpush1.bf16.msra.mxu0 0
  %1063 = vmatprep.subr.bf16.mxu0 0
  %1064 = vmatpush1.bf16.msra.mxu0 0
  %1065 = vmatprep.mubr.bf16.mxu0 0
  %1066 = vmatmul.mubr.bf16.gmra.mrb[0].mxu0 %v1031
  %v1067 = vpop.f32.mrb[0].mxu0
  %v1068 = vadd.f32 0.0, %v1067
  %v1069 = vpop.f32.mrb[0].mxu0
  %v1070 = vpop.f32.mrb[0].mxu0
  %v1071 = vadd.f32 0.0, %v1070
  %v1072 = vpop.f32.mrb[0].mxu0
  %1073 = vdwg.mxu0
  %1074 = vrot.lane.b32.xlu0 %v254, 64
  %v1075 = vpop.permute.xlu0 %1074
  %v1078 = vsel %vm366, %v1026, 0
  %1080 = vmatprep.subr.bf16.mxu0 0
  %1081 = vmatpush1.bf16.msra.mxu0 %v1075
  %1082 = vmatprep.subr.bf16.mxu0 0
  %1083 = vmatpush1.bf16.msra.mxu0 0
  %1084 = vmatprep.subr.bf16.mxu0 0
  %1085 = vmatpush1.bf16.msra.mxu0 0
  %1086 = vmatprep.subr.bf16.mxu0 0
  %1087 = vmatpush1.bf16.msra.mxu0 0
  %1088 = vmatprep.subr.bf16.mxu0 0
  %1089 = vmatpush1.bf16.msra.mxu0 0
  %1090 = vmatprep.subr.bf16.mxu0 0
  %1091 = vmatpush1.bf16.msra.mxu0 0
  %1092 = vmatprep.subr.bf16.mxu0 0
  %1093 = vmatpush1.bf16.msra.mxu0 0
  %1094 = vmatprep.subr.bf16.mxu0 0
  %1095 = vmatpush1.bf16.msra.mxu0 0
  %1096 = vmatprep.subr.bf16.mxu0 0
  %1097 = vmatpush1.bf16.msra.mxu0 0
  %1098 = vmatprep.subr.bf16.mxu0 0
  %1099 = vmatpush1.bf16.msra.mxu0 0
  %1100 = vmatprep.subr.bf16.mxu0 0
  %1101 = vmatpush1.bf16.msra.mxu0 0
  %1102 = vmatprep.subr.bf16.mxu0 0
  %1103 = vmatpush1.bf16.msra.mxu0 0
  %1104 = vmatprep.subr.bf16.mxu0 0
  %1105 = vmatpush1.bf16.msra.mxu0 0
  %1106 = vmatprep.subr.bf16.mxu0 0
  %1107 = vmatpush1.bf16.msra.mxu0 0
  %1108 = vmatprep.subr.bf16.mxu0 0
  %1109 = vmatpush1.bf16.msra.mxu0 0
  %1110 = vmatprep.subr.bf16.mxu0 0
  %1111 = vmatpush1.bf16.msra.mxu0 0
  %1112 = vmatprep.mubr.bf16.mxu0 0
  %1113 = vmatmul.mubr.bf16.gmra.mrb[0].mxu0 %v1078
  %v1114 = vpop.f32.mrb[0].mxu0
  %v1115 = vadd.f32 0.0, %v1114
  %v1116 = vpop.f32.mrb[0].mxu0
  %v1117 = vpop.f32.mrb[0].mxu0
  %v1118 = vadd.f32 0.0, %v1117
  %v1119 = vpop.f32.mrb[0].mxu0
  %1120 = vdwg.mxu0
  %v1121 = vrcp.pop %v1015
  %v1122 = vrcp.pop %v1018
  %v1123 = vrcp.pop %v1021
  %v1124 = vrcp.pop %v1024
  %v1125 = vmul.f32 %v1068, %v1121
  %v1126 = vmul.f32 %v1071, %v1122
  %v1127 = vmul.f32 %v1115, %v1123
  %v1128 = vmul.f32 %v1118, %v1124
  %v1129 = vpack.c.bf16 %v1126, %v1125
  %v1130 = vpack.c.bf16 %v1128, %v1127
  %v1135 = vunpack.c.l.b16 %v263
  %v1136 = vunpack.c.l.b16 %v264
  %v1137 = vunpack.c.l.b16 %v265
  %v1138 = vunpack.c.l.b16 %v266
  %v1139 = vpack.c.b16 %v1136, %v1135
  %v1140 = vpack.c.b16 %v1138, %v1137
  %v1144 = vsel %vm271, %v1129, 0
  %v1147 = vsel %vm271, %v1130, 0
  %1149 = vmatprep.subr.bf16.mxu0 0
  %1150 = vmatpush1.bf16.msra.mxu0 %v1139
  %1151 = vmatprep.subr.bf16.mxu0 0
  %1152 = vmatpush1.bf16.msra.mxu0 %v1140
  %1153 = vmatprep.subr.bf16.mxu0 0
  %1154 = vmatpush1.bf16.msra.mxu0 0
  %1155 = vmatprep.subr.bf16.mxu0 0
  %1156 = vmatpush1.bf16.msra.mxu0 0
  %1157 = vmatprep.subr.bf16.mxu0 0
  %1158 = vmatpush1.bf16.msra.mxu0 0
  %1159 = vmatprep.subr.bf16.mxu0 0
  %1160 = vmatpush1.bf16.msra.mxu0 0
  %1161 = vmatprep.subr.bf16.mxu0 0
  %1162 = vmatpush1.bf16.msra.mxu0 0
  %1163 = vmatprep.subr.bf16.mxu0 0
  %1164 = vmatpush1.bf16.msra.mxu0 0
  %1165 = vmatprep.subr.bf16.mxu0 0
  %1166 = vmatpush1.bf16.msra.mxu0 0
  %1167 = vmatprep.subr.bf16.mxu0 0
  %1168 = vmatpush1.bf16.msra.mxu0 0
  %1169 = vmatprep.subr.bf16.mxu0 0
  %1170 = vmatpush1.bf16.msra.mxu0 0
  %1171 = vmatprep.subr.bf16.mxu0 0
  %1172 = vmatpush1.bf16.msra.mxu0 0
  %1173 = vmatprep.subr.bf16.mxu0 0
  %1174 = vmatpush1.bf16.msra.mxu0 0
  %1175 = vmatprep.subr.bf16.mxu0 0
  %1176 = vmatpush1.bf16.msra.mxu0 0
  %1177 = vmatprep.subr.bf16.mxu0 0
  %1178 = vmatpush1.bf16.msra.mxu0 0
  %1179 = vmatprep.subr.bf16.mxu0 0
  %1180 = vmatpush1.bf16.msra.mxu0 0
  %1181 = vmatprep.mubr.bf16.mxu0 0
  %1182 = vmatmul.mubr.bf16.gmra.mrb[0].mxu0 %v1144
  %v1183 = vpop.f32.mrb[0].mxu0
  %v1184 = vadd.f32 0.0, %v1183
  %v1185 = vpop.f32.mrb[0].mxu0
  %v1186 = vpop.f32.mrb[0].mxu0
  %v1187 = vadd.f32 0.0, %v1186
  %v1188 = vpop.f32.mrb[0].mxu0
  %1189 = vmatprep.mubr.bf16.mxu0 0
  %1190 = vmatmul.mubr.bf16.gmra.mrb[0].mxu0 %v1147
  %v1191 = vpop.f32.mrb[0].mxu0
  %v1192 = vadd.f32 0.0, %v1191
  %v1193 = vpop.f32.mrb[0].mxu0
  %v1194 = vpop.f32.mrb[0].mxu0
  %v1195 = vadd.f32 0.0, %v1194
  %v1196 = vpop.f32.mrb[0].mxu0
  %1197 = vdwg.mxu0
  %v1198 = vadd.f32 %v873, %v1184
  %v1199 = vadd.f32 %v876, %v1187
  %v1200 = vadd.f32 %v881, %v1192
  %v1201 = vadd.f32 %v884, %v1195
  %1202 = vrot.lane.b32.xlu0 %v249, 32
  %v1203 = vpop.permute.xlu0 %1202
  %1204 = vrot.lane.b32.xlu0 %v250, 32
  %v1205 = vpop.permute.xlu0 %1204
  %v1207 = vsel %vm271, %v1203, 0
  %v1210 = vsel %vm271, %v1205, 0
  %1212 = vmatprep.subr.bf16.mxu0 0
  %1213 = vmatpush1.bf16.xpose.msra.mxu0 %v1210
  %1214 = vmatprep.subr.bf16.mxu0 0
  %1215 = vmatpush1.bf16.xpose.msra.mxu0 0
  %1216 = vmatprep.subr.bf16.mxu0 0
  %1217 = vmatpush1.bf16.xpose.msra.mxu0 0
  %1218 = vmatprep.subr.bf16.mxu0 0
  %1219 = vmatpush1.bf16.xpose.msra.mxu0 0
  %1220 = vmatprep.subr.bf16.mxu0 0
  %1221 = vmatpush1.bf16.xpose.msra.mxu0 0
  %1222 = vmatprep.subr.bf16.mxu0 0
  %1223 = vmatpush1.bf16.xpose.msra.mxu0 0
  %1224 = vmatprep.subr.bf16.mxu0 0
  %1225 = vmatpush1.bf16.xpose.msra.mxu0 0
  %1226 = vmatprep.subr.bf16.mxu0 0
  %1227 = vmatpush1.bf16.xpose.msra.mxu0 0
  %1228 = vmatprep.subr.bf16.mxu0 0
  %1229 = vmatpush1.bf16.xpose.msra.mxu0 0
  %1230 = vmatprep.subr.bf16.mxu0 0
  %1231 = vmatpush1.bf16.xpose.msra.mxu0 0
  %1232 = vmatprep.subr.bf16.mxu0 0
  %1233 = vmatpush1.bf16.xpose.msra.mxu0 0
  %1234 = vmatprep.subr.bf16.mxu0 0
  %1235 = vmatpush1.bf16.xpose.msra.mxu0 0
  %1236 = vmatprep.subr.bf16.mxu0 0
  %1237 = vmatpush1.bf16.xpose.msra.mxu0 0
  %1238 = vmatprep.subr.bf16.mxu0 0
  %1239 = vmatpush1.bf16.xpose.msra.mxu0 0
  %1240 = vmatprep.subr.bf16.mxu0 0
  %1241 = vmatpush1.bf16.xpose.msra.mxu0 0
  %1242 = vmatprep.subr.bf16.mxu0 0
  %1243 = vmatpush1.bf16.xpose.msra.mxu0 0
  %1244 = vmatprep.mubr.bf16.mxu0 0
  %1245 = vmatmul.mubr.bf16.gmra.mrb[0].mxu0 %v1207
  %v1246 = vpop.f32.mrb[0].mxu0
  %v1247 = vadd.f32 0.0, %v1246
  %v1248 = vpop.f32.mrb[0].mxu0
  %v1249 = vpop.f32.mrb[0].mxu0
  %v1250 = vadd.f32 0.0, %v1249
  %v1251 = vpop.f32.mrb[0].mxu0
  %1252 = vdwg.mxu0
  %1253 = vrot.lane.b32.xlu0 %v252, 32
  %v1254 = vpop.permute.xlu0 %1253
  %1255 = vrot.lane.b32.xlu0 %v253, 32
  %v1256 = vpop.permute.xlu0 %1255
  %v1258 = vsel %vm271, %v1254, 0
  %v1261 = vsel %vm271, %v1256, 0
  %1263 = vmatprep.subr.bf16.mxu0 0
  %1264 = vmatpush1.bf16.xpose.msra.mxu0 %v1261
  %1265 = vmatprep.subr.bf16.mxu0 0
  %1266 = vmatpush1.bf16.xpose.msra.mxu0 0
  %1267 = vmatprep.subr.bf16.mxu0 0
  %1268 = vmatpush1.bf16.xpose.msra.mxu0 0
  %1269 = vmatprep.subr.bf16.mxu0 0
  %1270 = vmatpush1.bf16.xpose.msra.mxu0 0
  %1271 = vmatprep.subr.bf16.mxu0 0
  %1272 = vmatpush1.bf16.xpose.msra.mxu0 0
  %1273 = vmatprep.subr.bf16.mxu0 0
  %1274 = vmatpush1.bf16.xpose.msra.mxu0 0
  %1275 = vmatprep.subr.bf16.mxu0 0
  %1276 = vmatpush1.bf16.xpose.msra.mxu0 0
  %1277 = vmatprep.subr.bf16.mxu0 0
  %1278 = vmatpush1.bf16.xpose.msra.mxu0 0
  %1279 = vmatprep.subr.bf16.mxu0 0
  %1280 = vmatpush1.bf16.xpose.msra.mxu0 0
  %1281 = vmatprep.subr.bf16.mxu0 0
  %1282 = vmatpush1.bf16.xpose.msra.mxu0 0
  %1283 = vmatprep.subr.bf16.mxu0 0
  %1284 = vmatpush1.bf16.xpose.msra.mxu0 0
  %1285 = vmatprep.subr.bf16.mxu0 0
  %1286 = vmatpush1.bf16.xpose.msra.mxu0 0
  %1287 = vmatprep.subr.bf16.mxu0 0
  %1288 = vmatpush1.bf16.xpose.msra.mxu0 0
  %1289 = vmatprep.subr.bf16.mxu0 0
  %1290 = vmatpush1.bf16.xpose.msra.mxu0 0
  %1291 = vmatprep.subr.bf16.mxu0 0
  %1292 = vmatpush1.bf16.xpose.msra.mxu0 0
  %1293 = vmatprep.subr.bf16.mxu0 0
  %1294 = vmatpush1.bf16.xpose.msra.mxu0 0
  %1295 = vmatprep.mubr.bf16.mxu0 0
  %1296 = vmatmul.mubr.bf16.gmra.mrb[0].mxu0 %v1258
  %v1297 = vpop.f32.mrb[0].mxu0
  %v1298 = vadd.f32 0.0, %v1297
  %v1299 = vpop.f32.mrb[0].mxu0
  %v1300 = vpop.f32.mrb[0].mxu0
  %v1301 = vadd.f32 0.0, %v1300
  %v1302 = vpop.f32.mrb[0].mxu0
  %1303 = vdwg.mxu0
  %v1304 = vsel %vm366, %v1247, -inf
  %1305 = vmax.xlane.f32.xlu0 %v1304
  %v1306 = vpop.xlane.xlu0 %1305
  %v1307 = vsel %vm366, %v1250, -inf
  %1308 = vmax.xlane.f32.xlu0 %v1307
  %v1309 = vpop.xlane.xlu0 %1308
  %v1310 = vsel %vm366, %v1298, -inf
  %1311 = vmax.xlane.f32.xlu0 %v1310
  %v1312 = vpop.xlane.xlu0 %1311
  %v1313 = vsel %vm366, %v1301, -inf
  %1314 = vmax.xlane.f32.xlu0 %v1313
  %v1315 = vpop.xlane.xlu0 %1314
  %v1316 = vsub.f32 %v1247, %v1306
  %v1317 = vsub.f32 %v1250, %v1309
  %v1318 = vsub.f32 %v1298, %v1312
  %v1319 = vsub.f32 %v1301, %v1315
  %v1320 = vmul.f32 %v1316, 1.442695
  %v1321 = vpow.pop %v1320
  %v1322 = vmul.f32 %v1317, 1.442695
  %v1323 = vpow.pop %v1322
  %v1324 = vmul.f32 %v1318, 1.442695
  %v1325 = vpow.pop %v1324
  %v1326 = vmul.f32 %v1319, 1.442695
  %v1327 = vpow.pop %v1326
  %v1328 = vsel %vm366, %v1321, 0.0
  %1329 = vadd.xlane.f32.xlu0 %v1328
  %v1330 = vpop.xlane.xlu0 %1329
  %v1331 = vsel %vm366, %v1323, 0.0
  %1332 = vadd.xlane.f32.xlu0 %v1331
  %v1333 = vpop.xlane.xlu0 %1332
  %v1334 = vsel %vm366, %v1325, 0.0
  %1335 = vadd.xlane.f32.xlu0 %v1334
  %v1336 = vpop.xlane.xlu0 %1335
  %v1337 = vsel %vm366, %v1327, 0.0
  %1338 = vadd.xlane.f32.xlu0 %v1337
  %v1339 = vpop.xlane.xlu0 %1338
  %v1340 = vpack.c.bf16 %v1323, %v1321
  %v1341 = vpack.c.bf16 %v1327, %v1325
  %1342 = vrot.lane.b32.xlu0 %v251, 32
  %v1343 = vpop.permute.xlu0 %1342
  %v1346 = vsel %vm366, %v1340, 0
  %1348 = vmatprep.subr.bf16.mxu0 0
  %1349 = vmatpush1.bf16.msra.mxu0 %v1343
  %1350 = vmatprep.subr.bf16.mxu0 0
  %1351 = vmatpush1.bf16.msra.mxu0 0
  %1352 = vmatprep.subr.bf16.mxu0 0
  %1353 = vmatpush1.bf16.msra.mxu0 0
  %1354 = vmatprep.subr.bf16.mxu0 0
  %1355 = vmatpush1.bf16.msra.mxu0 0
  %1356 = vmatprep.subr.bf16.mxu0 0
  %1357 = vmatpush1.bf16.msra.mxu0 0
  %1358 = vmatprep.subr.bf16.mxu0 0
  %1359 = vmatpush1.bf16.msra.mxu0 0
  %1360 = vmatprep.subr.bf16.mxu0 0
  %1361 = vmatpush1.bf16.msra.mxu0 0
  %1362 = vmatprep.subr.bf16.mxu0 0
  %1363 = vmatpush1.bf16.msra.mxu0 0
  %1364 = vmatprep.subr.bf16.mxu0 0
  %1365 = vmatpush1.bf16.msra.mxu0 0
  %1366 = vmatprep.subr.bf16.mxu0 0
  %1367 = vmatpush1.bf16.msra.mxu0 0
  %1368 = vmatprep.subr.bf16.mxu0 0
  %1369 = vmatpush1.bf16.msra.mxu0 0
  %1370 = vmatprep.subr.bf16.mxu0 0
  %1371 = vmatpush1.bf16.msra.mxu0 0
  %1372 = vmatprep.subr.bf16.mxu0 0
  %1373 = vmatpush1.bf16.msra.mxu0 0
  %1374 = vmatprep.subr.bf16.mxu0 0
  %1375 = vmatpush1.bf16.msra.mxu0 0
  %1376 = vmatprep.subr.bf16.mxu0 0
  %1377 = vmatpush1.bf16.msra.mxu0 0
  %1378 = vmatprep.subr.bf16.mxu0 0
  %1379 = vmatpush1.bf16.msra.mxu0 0
  %1380 = vmatprep.mubr.bf16.mxu0 0
  %1381 = vmatmul.mubr.bf16.gmra.mrb[0].mxu0 %v1346
  %v1382 = vpop.f32.mrb[0].mxu0
  %v1383 = vadd.f32 0.0, %v1382
  %v1384 = vpop.f32.mrb[0].mxu0
  %v1385 = vpop.f32.mrb[0].mxu0
  %v1386 = vadd.f32 0.0, %v1385
  %v1387 = vpop.f32.mrb[0].mxu0
  %1388 = vdwg.mxu0
  %1389 = vrot.lane.b32.xlu0 %v254, 32
  %v1390 = vpop.permute.xlu0 %1389
  %v1393 = vsel %vm366, %v1341, 0
  %1395 = vmatprep.subr.bf16.mxu0 0
  %1396 = vmatpush1.bf16.msra.mxu0 %v1390
  %1397 = vmatprep.subr.bf16.mxu0 0
  %1398 = vmatpush1.bf16.msra.mxu0 0
  %1399 = vmatprep.subr.bf16.mxu0 0
  %1400 = vmatpush1.bf16.msra.mxu0 0
  %1401 = vmatprep.subr.bf16.mxu0 0
  %1402 = vmatpush1.bf16.msra.mxu0 0
  %1403 = vmatprep.subr.bf16.mxu0 0
  %1404 = vmatpush1.bf16.msra.mxu0 0
  %1405 = vmatprep.subr.bf16.mxu0 0
  %1406 = vmatpush1.bf16.msra.mxu0 0
  %1407 = vmatprep.subr.bf16.mxu0 0
  %1408 = vmatpush1.bf16.msra.mxu0 0
  %1409 = vmatprep.subr.bf16.mxu0 0
  %1410 = vmatpush1.bf16.msra.mxu0 0
  %1411 = vmatprep.subr.bf16.mxu0 0
  %1412 = vmatpush1.bf16.msra.mxu0 0
  %1413 = vmatprep.subr.bf16.mxu0 0
  %1414 = vmatpush1.bf16.msra.mxu0 0
  %1415 = vmatprep.subr.bf16.mxu0 0
  %1416 = vmatpush1.bf16.msra.mxu0 0
  %1417 = vmatprep.subr.bf16.mxu0 0
  %1418 = vmatpush1.bf16.msra.mxu0 0
  %1419 = vmatprep.subr.bf16.mxu0 0
  %1420 = vmatpush1.bf16.msra.mxu0 0
  %1421 = vmatprep.subr.bf16.mxu0 0
  %1422 = vmatpush1.bf16.msra.mxu0 0
  %1423 = vmatprep.subr.bf16.mxu0 0
  %1424 = vmatpush1.bf16.msra.mxu0 0
  %1425 = vmatprep.subr.bf16.mxu0 0
  %1426 = vmatpush1.bf16.msra.mxu0 0
  %1427 = vmatprep.mubr.bf16.mxu0 0
  %1428 = vmatmul.mubr.bf16.gmra.mrb[0].mxu0 %v1393
  %v1429 = vpop.f32.mrb[0].mxu0
  %v1430 = vadd.f32 0.0, %v1429
  %v1431 = vpop.f32.mrb[0].mxu0
  %v1432 = vpop.f32.mrb[0].mxu0
  %v1433 = vadd.f32 0.0, %v1432
  %v1434 = vpop.f32.mrb[0].mxu0
  %1435 = vdwg.mxu0
  %v1436 = vrcp.pop %v1330
  %v1437 = vrcp.pop %v1333
  %v1438 = vrcp.pop %v1336
  %v1439 = vrcp.pop %v1339
  %v1440 = vmul.f32 %v1383, %v1436
  %v1441 = vmul.f32 %v1386, %v1437
  %v1442 = vmul.f32 %v1430, %v1438
  %v1443 = vmul.f32 %v1433, %v1439
  %v1444 = vpack.c.bf16 %v1441, %v1440
  %v1445 = vpack.c.bf16 %v1443, %v1442
  %v1450 = vunpack.c.l.b16 %v267
  %v1451 = vunpack.c.l.b16 %v268
  %v1452 = vunpack.c.l.b16 %v269
  %v1453 = vunpack.c.l.b16 %v270
  %v1454 = vpack.c.b16 %v1451, %v1450
  %v1455 = vpack.c.b16 %v1453, %v1452
  %v1459 = vsel %vm271, %v1444, 0
  %v1462 = vsel %vm271, %v1445, 0
  %1464 = vmatprep.subr.bf16.mxu0 0
  %1465 = vmatpush1.bf16.msra.mxu0 %v1454
  %1466 = vmatprep.subr.bf16.mxu0 0
  %1467 = vmatpush1.bf16.msra.mxu0 %v1455
  %1468 = vmatprep.subr.bf16.mxu0 0
  %1469 = vmatpush1.bf16.msra.mxu0 0
  %1470 = vmatprep.subr.bf16.mxu0 0
  %1471 = vmatpush1.bf16.msra.mxu0 0
  %1472 = vmatprep.subr.bf16.mxu0 0
  %1473 = vmatpush1.bf16.msra.mxu0 0
  %1474 = vmatprep.subr.bf16.mxu0 0
  %1475 = vmatpush1.bf16.msra.mxu0 0
  %1476 = vmatprep.subr.bf16.mxu0 0
  %1477 = vmatpush1.bf16.msra.mxu0 0
  %1478 = vmatprep.subr.bf16.mxu0 0
  %1479 = vmatpush1.bf16.msra.mxu0 0
  %1480 = vmatprep.subr.bf16.mxu0 0
  %1481 = vmatpush1.bf16.msra.mxu0 0
  %1482 = vmatprep.subr.bf16.mxu0 0
  %1483 = vmatpush1.bf16.msra.mxu0 0
  %1484 = vmatprep.subr.bf16.mxu0 0
  %1485 = vmatpush1.bf16.msra.mxu0 0
  %1486 = vmatprep.subr.bf16.mxu0 0
  %1487 = vmatpush1.bf16.msra.mxu0 0
  %1488 = vmatprep.subr.bf16.mxu0 0
  %1489 = vmatpush1.bf16.msra.mxu0 0
  %1490 = vmatprep.subr.bf16.mxu0 0
  %1491 = vmatpush1.bf16.msra.mxu0 0
  %1492 = vmatprep.subr.bf16.mxu0 0
  %1493 = vmatpush1.bf16.msra.mxu0 0
  %1494 = vmatprep.subr.bf16.mxu0 0
  %1495 = vmatpush1.bf16.msra.mxu0 0
  %1496 = vmatprep.mubr.bf16.mxu0 0
  %1497 = vmatmul.mubr.bf16.gmra.mrb[0].mxu0 %v1459
  %v1498 = vpop.f32.mrb[0].mxu0
  %v1499 = vadd.f32 0.0, %v1498
  %v1500 = vpop.f32.mrb[0].mxu0
  %v1501 = vpop.f32.mrb[0].mxu0
  %v1502 = vadd.f32 0.0, %v1501
  %v1503 = vpop.f32.mrb[0].mxu0
  %1504 = vmatprep.mubr.bf16.mxu0 0
  %1505 = vmatmul.mubr.bf16.gmra.mrb[0].mxu0 %v1462
  %v1506 = vpop.f32.mrb[0].mxu0
  %v1507 = vadd.f32 0.0, %v1506
  %v1508 = vpop.f32.mrb[0].mxu0
  %v1509 = vpop.f32.mrb[0].mxu0
  %v1510 = vadd.f32 0.0, %v1509
  %v1511 = vpop.f32.mrb[0].mxu0
  %1512 = vdwg.mxu0
  %v1513 = vadd.f32 %v1198, %v1499
  %v1514 = vadd.f32 %v1199, %v1502
  %v1515 = vadd.f32 %v1200, %v1507
  %v1516 = vadd.f32 %v1201, %v1510
  %v1517 = vld [vmem:[%s4] sm:$0x1]
  %v1519 = vlaneseq
  %v1520 = vshrl.u32 %v1519, 7
  %v1521 = vsub.s32 0, %v1520
  %v1522 = vrot.slane %v1517, %v1521
  %v1524 = vadd.f32 %v1513, %v1522
  %v1525 = vadd.f32 %v1514, %v1522
  %v1526 = vadd.f32 %v1515, %v1522
  %v1527 = vadd.f32 %v1516, %v1522
  %v1528 = vadd.f32 %v1524, %v21
  %v1529 = vadd.f32 %v1525, %v22
  %v1530 = vadd.f32 %v1526, %v23
  %v1531 = vadd.f32 %v1527, %v24
  %1532 = vst.msk [vmem:[%s5] sm:$0xff] %vm25, %v1528
  %1533 = vst.msk [vmem:[%s5 + $0x8] sm:$0xff] %vm25, %v1529
  %1534 = vst.msk [vmem:[%s5 + $0x10] sm:$0xff] %vm25, %v1530
  %1535 = vst.msk [vmem:[%s5 + $0x18] sm:$0xff] %vm25, %v1531
  // Predicated region
  $region22: #{tpu_custom_call.1} parent=0 // pred_check
    _
  $region23: #{tpu_custom_call.1} parent=0 // pred_check_branch
    %1537 = sbr.rel (0) target = $region25
  $region24: #{tpu_custom_call.1} parent=0 // pred_region
    _
  $region25: #{tpu_custom_call.1} parent=0 // pred_fallthru
    _
  // Predicated region
  $region26: #{tpu_custom_call.1} parent=0 // pred_check
    _
  $region27: #{tpu_custom_call.1} parent=0 // pred_check_branch
    %1539 = sbr.rel (0) target = $region29
  $region28: #{tpu_custom_call.1} parent=0 // pred_region
    _
  $region29: #{tpu_custom_call.1} parent=0 // pred_fallthru
    _

</llo_original>
